<compile_context>
chip_gen: v6e
topology: v6e:2x2x1
jax: 0.10.0
libtpu: 0.0.40
codegen_flags: <defaults>
</compile_context>

<pallas_src>
import functools

import jax
import jax.numpy as jnp
from jax.experimental import pallas as pl
from jax.experimental.pallas import tpu as pltpu


def _round_up(n: int, m: int) -> int:
    return ((n + m - 1) // m) * m


def vae_forward_kernel(x_ref, eps_ref,
                       w_enc_ref, b_enc_ref,
                       w_stats_ref, b_stats_ref,
                       w_dec1_ref, b_dec1_ref,
                       w_dec2_ref, b_dec2_ref,
                       recon_ref, stats_ref):
    """One batch tile: encoder -> fused (mu|logvar) head -> reparam -> decoder."""
    latent_pad = eps_ref.shape[1]          # lane-aligned (multiple of 128)
    bf16 = jnp.bfloat16

    # bf16 cast of x happens in-kernel (hides under DMA on the VPU).
    x = x_ref[...].astype(bf16)            # (TB, obs)
    eps = eps_ref[...]                     # (TB, latent_pad) f32

    # Encoder: h = relu(x @ W_enc + b_enc)       (bf16 MXU operands, f32 acc)
    h = jnp.dot(x, w_enc_ref[...], preferred_element_type=jnp.float32)
    h = jnp.maximum(h + b_enc_ref[...], 0.0)

    # Fused latent heads: [mu | logvar] = h @ [W_mu | W_lv] + [b_mu | b_lv]
    # latent_pad is a multiple of 128, so the split lands on vreg boundaries.
    stats = jnp.dot(h.astype(bf16), w_stats_ref[...],
                    preferred_element_type=jnp.float32) + b_stats_ref[...]
    mu = stats[:, :latent_pad]
    logvar = stats[:, latent_pad:]

    # Reparameterization (f32 VPU/EUP): z = mu + exp(0.5 * logvar) * eps
    z = mu + jnp.exp(0.5 * logvar) * eps

    # Decoder: recon = tanh(relu(z @ W_d1 + b_d1) @ W_d2 + b_d2)
    d = jnp.dot(z.astype(bf16), w_dec1_ref[...],
                preferred_element_type=jnp.float32)
    d = jnp.maximum(d + b_dec1_ref[...], 0.0)
    recon = jnp.tanh(
        jnp.dot(d.astype(bf16), w_dec2_ref[...],
                preferred_element_type=jnp.float32) + b_dec2_ref[...])

    recon_ref[...] = recon.astype(recon_ref.dtype)
    stats_ref[...] = stats.astype(stats_ref.dtype)   # packed [mu | logvar]


def _pick_tile(batch: int, tile_b: int) -> int:
    """Largest useful tile <= tile_b; keep >= 2 grid steps (v7x 2-TC megacore)
    whenever the batch is large enough to split."""
    tile = min(tile_b, _round_up(batch, 8))
    if batch > 256 and -(-batch // tile) < 2:
        tile = max(128, _round_up(-(-batch // 2), 128))
    return tile


@functools.partial(jax.jit, static_argnames=("tile_b",))
def vae_forward(x, eps, params, *, tile_b=512):
    """Fused VAE forward.

    x:      [B, obs_dim]  float32
    eps:    [B, latent]   float32 (pre-drawn standard-normal noise)
    params: prepare_params(...) output — fused, latent-padded, bf16 weights:
            (w_enc, b_enc, w_stats, b_stats, w_dec1, b_dec1, w_dec2, b_dec2)
    Returns (recon [B, obs_dim], mu [B, latent], logvar [B, latent]), all f32.
    """
    w_enc, b_enc, w_stats, b_stats, w_d1, b_d1, w_d2, b_d2 = params
    B, obs_dim = x.shape
    latent = eps.shape[1]
    hidden = w_enc.shape[1]
    two_latent_pad = w_stats.shape[1]
    latent_pad = two_latent_pad // 2
    assert w_d1.shape[0] == latent_pad and latent_pad % 128 == 0
    assert latent <= latent_pad

    # Pad eps on the latent axis only (tiny; padded latent columns contribute
    # zero because the padded rows of W_dec1 / columns of W_stats are zero).
    if latent_pad != latent:
        eps = jnp.pad(eps, ((0, 0), (0, latent_pad - latent)))

    tile = _pick_tile(B, tile_b)
    n_tiles = pl.cdiv(B, tile)

    # Activation tiles follow the grid; weights/biases stay resident (const
    # index_map).  Ragged last block: OOB reads are padded, OOB writes masked
    # by Pallas, so no wrapper-side batch padding / extra HBM traffic.
    act_spec = lambda d: pl.BlockSpec((tile, d), lambda i: (i, 0))
    resident = lambda arr: pl.BlockSpec(arr.shape, lambda i: (0, 0))

    in_specs = [
        act_spec(obs_dim),              # x (f32, cast to bf16 in-kernel)
        act_spec(latent_pad),           # eps
        resident(w_enc), resident(b_enc),
        resident(w_stats), resident(b_stats),
        resident(w_d1), resident(b_d1),
        resident(w_d2), resident(b_d2),
    ]
    out_specs = (
        act_spec(obs_dim),              # recon
        act_spec(two_latent_pad),       # packed [mu | logvar] (lane-dense slab)
    )
    out_shape = (
        jax.ShapeDtypeStruct((B, obs_dim), jnp.float32),
        jax.ShapeDtypeStruct((B, two_latent_pad), jnp.float32),
    )

    # VMEM budget: resident params are still double-buffered by the pipeline
    # (2x), as are the streaming in/out activation tiles; ~8 MiB headroom for
    # f32 intermediates.  Cap at 48 MiB (headroom on v7x's 64 MiB physical).
    param_bytes = sum(int(a.size) * a.dtype.itemsize
                      for a in (w_enc, b_enc, w_stats, b_stats,
                                w_d1, b_d1, w_d2, b_d2))
    in_tile_bytes = tile * (obs_dim + latent_pad) * 4
    out_tile_bytes = tile * (obs_dim + two_latent_pad) * 4
    vmem_limit = 2 * param_bytes + 2 * (in_tile_bytes + out_tile_bytes) + (8 << 20)
    vmem_limit = int(min(max(vmem_limit, 16 << 20), 48 << 20))

    cost = pl.CostEstimate(
        flops=2 * B * (obs_dim * hidden + hidden * two_latent_pad
                       + latent_pad * hidden + hidden * obs_dim),
        transcendentals=B * (latent_pad + obs_dim),          # exp + tanh
        bytes_accessed=(int(x.size) * 4 + int(eps.size) * 4 + param_bytes
                        + B * (obs_dim + two_latent_pad) * 4),
    )

    recon, stats = pl.pallas_call(
        vae_forward_kernel,
        out_shape=out_shape,
        grid_spec=pltpu.PrefetchScalarGridSpec(
            num_scalar_prefetch=0,
            grid=(n_tiles,),
            in_specs=in_specs,
            out_specs=out_specs,
        ),
        compiler_params=pltpu.CompilerParams(
            dimension_semantics=("parallel",),
            vmem_limit_bytes=vmem_limit,
        ),
        cost_estimate=cost,
    )(x, eps, w_enc, b_enc, w_stats, b_stats, w_d1, b_d1, w_d2, b_d2)

    mu = stats[:, :latent]
    logvar = stats[:, latent_pad:latent_pad + latent]
    return recon, mu, logvar


def init_params(key, obs_dim, hidden, latent):
    """Deterministic synthetic parameters (Linear-layer shapes), f32, separate heads."""
    ks = jax.random.split(key, 6)
    scale = 0.05
    w_enc = scale * jax.random.normal(ks[0], (obs_dim, hidden), jnp.float32)
    b_enc = jnp.zeros((1, hidden), jnp.float32)
    w_mu = scale * jax.random.normal(ks[1], (hidden, latent), jnp.float32)
    b_mu = jnp.zeros((1, latent), jnp.float32)
    w_lv = scale * jax.random.normal(ks[2], (hidden, latent), jnp.float32)
    b_lv = jnp.zeros((1, latent), jnp.float32)
    w_d1 = scale * jax.random.normal(ks[3], (latent, hidden), jnp.float32)
    b_d1 = jnp.zeros((1, hidden), jnp.float32)
    w_d2 = scale * jax.random.normal(ks[4], (hidden, obs_dim), jnp.float32)
    b_d2 = jnp.zeros((1, obs_dim), jnp.float32)
    return (w_enc, b_enc, w_mu, b_mu, w_lv, b_lv, w_d1, b_d1, w_d2, b_d2)


def prepare_params(separate_params, *, lane=128):
    """One-time prep: fuse the (mu, logvar) heads, zero-pad latent to a
    lane/MXU-aligned width, cast weights to bf16 (biases stay f32)."""
    w_enc, b_enc, w_mu, b_mu, w_lv, b_lv, w_d1, b_d1, w_d2, b_d2 = separate_params
    latent = w_mu.shape[1]
    latent_pad = _round_up(latent, lane)
    pad_c = latent_pad - latent
    bf16 = jnp.bfloat16

    pad_cols = lambda a: jnp.pad(a, ((0, 0), (0, pad_c)))
    w_stats = jnp.concatenate([pad_cols(w_mu), pad_cols(w_lv)], axis=1)
    b_stats = jnp.concatenate([pad_cols(b_mu), pad_cols(b_lv)], axis=1)
    w_d1p = jnp.pad(w_d1, ((0, pad_c), (0, 0)))   # zero rows: padded z is inert

    return (w_enc.astype(bf16), b_enc.astype(jnp.float32),
            w_stats.astype(bf16), b_stats.astype(jnp.float32),
            w_d1p.astype(bf16), b_d1.astype(jnp.float32),
            w_d2.astype(bf16), b_d2.astype(jnp.float32))


def ref_forward(x, eps, separate_params):
    """Pure-JAX reference mirroring the kernel math (bf16 MXU operands, f32 acc)."""
    w_enc, b_enc, w_mu, b_mu, w_lv, b_lv, w_d1, b_d1, w_d2, b_d2 = separate_params
    bf16 = jnp.bfloat16

    def mm(a, w):
        return jnp.dot(a.astype(bf16), w.astype(bf16),
                       preferred_element_type=jnp.float32)

    h = jnp.maximum(mm(x, w_enc) + b_enc, 0.0)
    mu = mm(h, w_mu) + b_mu
    lv = mm(h, w_lv) + b_lv
    z = mu + jnp.exp(0.5 * lv) * eps
    d = jnp.maximum(mm(z, w_d1) + b_d1, 0.0)
    recon = jnp.tanh(mm(d, w_d2) + b_d2)
    return recon, mu, lv


if __name__ == "__main__":
    # Small but lane/MXU-aligned model dims.  B=200 with tile_b=128 exercises
    # a 2-step grid AND the ragged last tile (no wrapper-side batch padding).
    B, obs_dim, hidden, latent = 200, 128, 256, 64
    TILE_B = 128

    key = jax.random.PRNGKey(0)
    k_x, k_eps, k_p = jax.random.split(key, 3)

    x = jax.random.normal(k_x, (B, obs_dim), jnp.float32)
    eps = jax.random.normal(k_eps, (B, latent), jnp.float32)
    separate_params = init_params(k_p, obs_dim, hidden, latent)
    fused_params = prepare_params(separate_params)   # latent zero-padded to 128

    recon, mu, logvar = vae_forward(x, eps, fused_params, tile_b=TILE_B)
    jax.block_until_ready((recon, mu, logvar))

    recon_r, mu_r, lv_r = ref_forward(x, eps, separate_params)

    assert recon.shape == (B, obs_dim)
    assert mu.shape == (B, latent) and logvar.shape == (B, latent)
    assert jnp.allclose(recon, recon_r, atol=5e-3, rtol=5e-3), "recon mismatch"
    assert jnp.allclose(mu, mu_r, atol=5e-3, rtol=5e-3), "mu mismatch"
    assert jnp.allclose(logvar, lv_r, atol=5e-3, rtol=5e-3), "logvar mismatch"

    print("KERNEL_OK")
</pallas_src>

<mosaic_0001>
module attributes {stable_mosaic.version = 11 : i64} {
  func.func @vae_forward_kernel(%arg0: i32, %arg1: memref<128x128xf32, #tpu.memory_space<vmem>>, %arg2: memref<128x128xf32, #tpu.memory_space<vmem>>, %arg3: memref<128x256xbf16, #tpu.memory_space<vmem>>, %arg4: memref<1x256xf32, #tpu.memory_space<vmem>>, %arg5: memref<256x256xbf16, #tpu.memory_space<vmem>>, %arg6: memref<1x256xf32, #tpu.memory_space<vmem>>, %arg7: memref<128x256xbf16, #tpu.memory_space<vmem>>, %arg8: memref<1x256xf32, #tpu.memory_space<vmem>>, %arg9: memref<256x128xbf16, #tpu.memory_space<vmem>>, %arg10: memref<1x128xf32, #tpu.memory_space<vmem>>, %arg11: memref<128x128xf32, #tpu.memory_space<vmem>>, %arg12: memref<128x256xf32, #tpu.memory_space<vmem>>) attributes {dimension_semantics = [#tpu.dimension_semantics<parallel>], iteration_bounds = array<i64: 2>, scalar_prefetch = 0 : i64, scratch_operands = 0 : i64, tpu.core_type = #tpu.core_type<tc>, window_params = [{transform_indices = @transform_0, window_bounds = array<i64: 128, 128>}, {transform_indices = @transform_1, window_bounds = array<i64: 128, 128>}, {pipeline_mode = #tpu.pipeline_mode<synchronous>, transform_indices = @transform_2, window_bounds = array<i64: 128, 256>}, {pipeline_mode = #tpu.pipeline_mode<synchronous>, transform_indices = @transform_3, window_bounds = array<i64: 1, 256>}, {pipeline_mode = #tpu.pipeline_mode<synchronous>, transform_indices = @transform_4, window_bounds = array<i64: 256, 256>}, {pipeline_mode = #tpu.pipeline_mode<synchronous>, transform_indices = @transform_5, window_bounds = array<i64: 1, 256>}, {pipeline_mode = #tpu.pipeline_mode<synchronous>, transform_indices = @transform_6, window_bounds = array<i64: 128, 256>}, {pipeline_mode = #tpu.pipeline_mode<synchronous>, transform_indices = @transform_7, window_bounds = array<i64: 1, 256>}, {pipeline_mode = #tpu.pipeline_mode<synchronous>, transform_indices = @transform_8, window_bounds = array<i64: 256, 128>}, {pipeline_mode = #tpu.pipeline_mode<synchronous>, transform_indices = @transform_9, window_bounds = array<i64: 1, 128>}, {transform_indices = @transform_10, window_bounds = array<i64: 128, 128>}, {transform_indices = @transform_11, window_bounds = array<i64: 128, 256>}]} {
    %c0 = arith.constant 0 : index
    %c0_0 = arith.constant 0 : index
    %0 = vector.load %arg1[%c0, %c0_0] : memref<128x128xf32, #tpu.memory_space<vmem>>, vector<128x128xf32>
    %1 = arith.truncf %0 : vector<128x128xf32> to vector<128x128xbf16>
    %c0_1 = arith.constant 0 : index
    %c0_2 = arith.constant 0 : index
    %2 = vector.load %arg2[%c0_1, %c0_2] : memref<128x128xf32, #tpu.memory_space<vmem>>, vector<128x128xf32>
    %c0_3 = arith.constant 0 : index
    %c0_4 = arith.constant 0 : index
    %3 = vector.load %arg3[%c0_3, %c0_4] : memref<128x256xbf16, #tpu.memory_space<vmem>>, vector<128x256xbf16>
    %cst = arith.constant dense<0.000000e+00> : vector<128x256xf32>
    %4 = tpu.matmul %1, %3, %cst {dimension_numbers = #tpu.dot_dimension_numbers<[1], [0], [0], [1], [0, 0, 1, 1], [], []>} : vector<128x128xbf16>, vector<128x256xbf16>, vector<128x256xf32> -> vector<128x256xf32>
    %c0_5 = arith.constant 0 : index
    %c0_6 = arith.constant 0 : index
    %5 = vector.load %arg4[%c0_5, %c0_6] : memref<1x256xf32, #tpu.memory_space<vmem>>, vector<1x256xf32>
    %6 = vector.broadcast %5 : vector<1x256xf32> to vector<128x256xf32>
    %7 = arith.addf %4, %6 : vector<128x256xf32>
    %cst_7 = arith.constant 0.000000e+00 : f32
    %8 = vector.broadcast %cst_7 : f32 to vector<128x256xf32>
    %9 = arith.maximumf %7, %8 : vector<128x256xf32>
    %10 = arith.truncf %9 : vector<128x256xf32> to vector<128x256xbf16>
    %c0_8 = arith.constant 0 : index
    %c0_9 = arith.constant 0 : index
    %11 = vector.load %arg5[%c0_8, %c0_9] : memref<256x256xbf16, #tpu.memory_space<vmem>>, vector<256x256xbf16>
    %cst_10 = arith.constant dense<0.000000e+00> : vector<128x256xf32>
    %12 = tpu.matmul %10, %11, %cst_10 {dimension_numbers = #tpu.dot_dimension_numbers<[1], [0], [0], [1], [0, 0, 1, 1], [], []>} : vector<128x256xbf16>, vector<256x256xbf16>, vector<128x256xf32> -> vector<128x256xf32>
    %c0_11 = arith.constant 0 : index
    %c0_12 = arith.constant 0 : index
    %13 = vector.load %arg6[%c0_11, %c0_12] : memref<1x256xf32, #tpu.memory_space<vmem>>, vector<1x256xf32>
    %14 = vector.broadcast %13 : vector<1x256xf32> to vector<128x256xf32>
    %15 = arith.addf %12, %14 : vector<128x256xf32>
    %16 = vector.extract_strided_slice %15 {offsets = [0, 0], sizes = [128, 128], strides = [1, 1]} : vector<128x256xf32> to vector<128x128xf32>
    %17 = vector.extract_strided_slice %15 {offsets = [0, 128], sizes = [128, 128], strides = [1, 1]} : vector<128x256xf32> to vector<128x128xf32>
    %cst_13 = arith.constant 5.000000e-01 : f32
    %18 = vector.broadcast %cst_13 : f32 to vector<128x128xf32>
    %19 = arith.mulf %18, %17 : vector<128x128xf32>
    %20 = math.exp %19 : vector<128x128xf32>
    %21 = arith.mulf %20, %2 : vector<128x128xf32>
    %22 = arith.addf %16, %21 : vector<128x128xf32>
    %23 = arith.truncf %22 : vector<128x128xf32> to vector<128x128xbf16>
    %c0_14 = arith.constant 0 : index
    %c0_15 = arith.constant 0 : index
    %24 = vector.load %arg7[%c0_14, %c0_15] : memref<128x256xbf16, #tpu.memory_space<vmem>>, vector<128x256xbf16>
    %cst_16 = arith.constant dense<0.000000e+00> : vector<128x256xf32>
    %25 = tpu.matmul %23, %24, %cst_16 {dimension_numbers = #tpu.dot_dimension_numbers<[1], [0], [0], [1], [0, 0, 1, 1], [], []>} : vector<128x128xbf16>, vector<128x256xbf16>, vector<128x256xf32> -> vector<128x256xf32>
    %c0_17 = arith.constant 0 : index
    %c0_18 = arith.constant 0 : index
    %26 = vector.load %arg8[%c0_17, %c0_18] : memref<1x256xf32, #tpu.memory_space<vmem>>, vector<1x256xf32>
    %27 = vector.broadcast %26 : vector<1x256xf32> to vector<128x256xf32>
    %28 = arith.addf %25, %27 : vector<128x256xf32>
    %cst_19 = arith.constant 0.000000e+00 : f32
    %29 = vector.broadcast %cst_19 : f32 to vector<128x256xf32>
    %30 = arith.maximumf %28, %29 : vector<128x256xf32>
    %31 = arith.truncf %30 : vector<128x256xf32> to vector<128x256xbf16>
    %c0_20 = arith.constant 0 : index
    %c0_21 = arith.constant 0 : index
    %32 = vector.load %arg9[%c0_20, %c0_21] : memref<256x128xbf16, #tpu.memory_space<vmem>>, vector<256x128xbf16>
    %cst_22 = arith.constant dense<0.000000e+00> : vector<128x128xf32>
    %33 = tpu.matmul %31, %32, %cst_22 {dimension_numbers = #tpu.dot_dimension_numbers<[1], [0], [0], [1], [0, 0, 1, 1], [], []>} : vector<128x256xbf16>, vector<256x128xbf16>, vector<128x128xf32> -> vector<128x128xf32>
    %c0_23 = arith.constant 0 : index
    %c0_24 = arith.constant 0 : index
    %34 = vector.load %arg10[%c0_23, %c0_24] : memref<1x128xf32, #tpu.memory_space<vmem>>, vector<1x128xf32>
    %35 = vector.broadcast %34 : vector<1x128xf32> to vector<128x128xf32>
    %36 = arith.addf %33, %35 : vector<128x128xf32>
    %37 = math.tanh %36 : vector<128x128xf32>
    %c0_25 = arith.constant 0 : index
    %c0_26 = arith.constant 0 : index
    %38 = vector.load %arg11[%c0_25, %c0_26] : memref<128x128xf32, #tpu.memory_space<vmem>>, vector<128x128xf32>
    tpu.vector_store %arg11[%c0_25, %c0_26], %37 {strides = array<i32>} : memref<128x128xf32, #tpu.memory_space<vmem>>, vector<128x128xf32>,
    %c0_27 = arith.constant 0 : index
    %c0_28 = arith.constant 0 : index
    %39 = vector.load %arg12[%c0_27, %c0_28] : memref<128x256xf32, #tpu.memory_space<vmem>>, vector<128x256xf32>
    tpu.vector_store %arg12[%c0_27, %c0_28], %15 {strides = array<i32>} : memref<128x256xf32, #tpu.memory_space<vmem>>, vector<128x256xf32>,
    return
  }
  func.func @transform_0(%arg0: i32) -> (i32, i32) {
    %c0_i32 = arith.constant 0 : i32
    %c0_i32_0 = arith.constant 0 : i32
    return %arg0, %c0_i32 : i32, i32
  }
  func.func @transform_1(%arg0: i32) -> (i32, i32) {
    %c0_i32 = arith.constant 0 : i32
    %c0_i32_0 = arith.constant 0 : i32
    return %arg0, %c0_i32 : i32, i32
  }
  func.func @transform_2(%arg0: i32) -> (i32, i32) {
    %c0_i32 = arith.constant 0 : i32
    %c0_i32_0 = arith.constant 0 : i32
    %c0_i32_1 = arith.constant 0 : i32
    return %c0_i32, %c0_i32_0 : i32, i32
  }
  func.func @transform_3(%arg0: i32) -> (i32, i32) {
    %c0_i32 = arith.constant 0 : i32
    %c0_i32_0 = arith.constant 0 : i32
    %c0_i32_1 = arith.constant 0 : i32
    return %c0_i32, %c0_i32_0 : i32, i32
  }
  func.func @transform_4(%arg0: i32) -> (i32, i32) {
    %c0_i32 = arith.constant 0 : i32
    %c0_i32_0 = arith.constant 0 : i32
    %c0_i32_1 = arith.constant 0 : i32
    return %c0_i32, %c0_i32_0 : i32, i32
  }
  func.func @transform_5(%arg0: i32) -> (i32, i32) {
    %c0_i32 = arith.constant 0 : i32
    %c0_i32_0 = arith.constant 0 : i32
    %c0_i32_1 = arith.constant 0 : i32
    return %c0_i32, %c0_i32_0 : i32, i32
  }
  func.func @transform_6(%arg0: i32) -> (i32, i32) {
    %c0_i32 = arith.constant 0 : i32
    %c0_i32_0 = arith.constant 0 : i32
    %c0_i32_1 = arith.constant 0 : i32
    return %c0_i32, %c0_i32_0 : i32, i32
  }
  func.func @transform_7(%arg0: i32) -> (i32, i32) {
    %c0_i32 = arith.constant 0 : i32
    %c0_i32_0 = arith.constant 0 : i32
    %c0_i32_1 = arith.constant 0 : i32
    return %c0_i32, %c0_i32_0 : i32, i32
  }
  func.func @transform_8(%arg0: i32) -> (i32, i32) {
    %c0_i32 = arith.constant 0 : i32
    %c0_i32_0 = arith.constant 0 : i32
    %c0_i32_1 = arith.constant 0 : i32
    return %c0_i32, %c0_i32_0 : i32, i32
  }
  func.func @transform_9(%arg0: i32) -> (i32, i32) {
    %c0_i32 = arith.constant 0 : i32
    %c0_i32_0 = arith.constant 0 : i32
    %c0_i32_1 = arith.constant 0 : i32
    return %c0_i32, %c0_i32_0 : i32, i32
  }
  func.func @transform_10(%arg0: i32) -> (i32, i32) {
    %c0_i32 = arith.constant 0 : i32
    %c0_i32_0 = arith.constant 0 : i32
    return %arg0, %c0_i32 : i32, i32
  }
  func.func @transform_11(%arg0: i32) -> (i32, i32) {
    %c0_i32 = arith.constant 0 : i32
    %c0_i32_0 = arith.constant 0 : i32
    return %arg0, %c0_i32 : i32, i32
  }
}

</mosaic_0001>

<llo_original>
// kernel: vae_forward.1
$region0: #{vae_forward.1}
  #allocation0 [shape = 'u32[]', space=smem, size = 0x4, offset = 0x4, fixed_abs, tag = 'smem constant byte address 0x4 - core index']
  #allocation1 [shape = 'u32[144,128]{1,0:T(1,128)}', space=vmem, size = 0x12000, scoped, tag = 'internal scratch']
  %s0 = inlined_call_operand.vmem [shape: f32[200,128], index: 0, kind: input, shape index: {}]
  %s1 = inlined_call_operand.vmem [shape: f32[200,128], index: 1, kind: input, shape index: {}]
  %s2 = inlined_call_operand.vmem [shape: bf16[128,256], index: 2, kind: input, shape index: {}]
  %s3 = inlined_call_operand.vmem [shape: f32[1,256], index: 3, kind: input, shape index: {}]
  %s4 = inlined_call_operand.vmem [shape: bf16[256,256], index: 4, kind: input, shape index: {}]
  %s5 = inlined_call_operand.vmem [shape: f32[1,256], index: 5, kind: input, shape index: {}]
  %s6 = inlined_call_operand.vmem [shape: bf16[128,256], index: 6, kind: input, shape index: {}]
  %s7 = inlined_call_operand.vmem [shape: f32[1,256], index: 7, kind: input, shape index: {}]
  %s8 = inlined_call_operand.hbm [shape: bf16[256,128], index: 8, kind: input, shape index: {}]
  %s9 = inlined_call_operand.vmem [shape: f32[1,128], index: 9, kind: input, shape index: {}]
  %s10 = inlined_call_operand.hbm [shape: f32[200,128], index: 10, kind: output, shape index: {0}]
  %s11 = inlined_call_operand.vmem [shape: f32[200,256], index: 11, kind: output, shape index: {1}]
  %12 = xla_tuple %s10, %s11
  %s13 = sld [smem:[#allocation0]]
  $region111: #{vae_forward.1} parent=0
    _
  %s15 = ssub.s32 1, %s13
  %s16 = scalar_select 0, %s15, %s13
  $region1: #{vae_forward.1} parent=0
    #allocation2 [shape = 'u8[65536]{0}', space=vmem, size = 0x10000, scoped, tag = 'input window, operand 8, single buffered']
    #allocation3 [shape = 's32[2]{0}', space=sflag, size = 0x8, scoped, tag = 'scoped memory for vae_forward.1']
    #allocation4 [shape = 's32[2]{0}', space=sflag, size = 0x8, scoped, tag = 'scoped memory for vae_forward.1']
    #allocation5 [shape = 'u8[131072]{0}', space=vmem, size = 0x20000, scoped, tag = 'output window, operand 0']
    #allocation6 [shape = 'u8[262144]{0}', space=vmem, size = 0x40000, scoped, tag = 'output window, operand 1']
    %17 = vsyncpa [#allocation3], 0
    %18 = vsyncpa [#allocation4], 0
    %s19 = scalar_lea.sflag [#allocation4], 1
    %20 = vsyncpa %s19, 0
    loop: start=0, step=1, limit=4
    $region2: #{vae_forward.1} parent=1 // loop_pre_header
      _
    $region3: #{vae_forward.1} parent=1 // loop_header
      %s22 = sphi 0, %s26
      %p23 = scmp.ge.s32.totalorder %s22, 4
      %s32 = sphi 0, %s34
      %s35 = sphi 0, %s32
      %s36 = sphi 0, %s35
      %s52 = sphi 0, %s36
      %s58 = sphi 0, %s60
      %s61 = sphi 0, %s58
      %s62 = sphi 0, %s61
      %s78 = sphi 0, %s62
      %s82 = sphi 0, %s82
      %s84 = sphi 0, %s82
      %s85 = sphi 0, %s84
      %s99 = sphi 0, %s85
      %s103 = sphi 0, %s103
      %s105 = sphi 0, %s103
      %s106 = sphi 0, %s105
      %s120 = sphi 0, %s106
      %s124 = sphi 0, %s124
      %s126 = sphi 0, %s124
      %s127 = sphi 0, %s126
      %s141 = sphi 0, %s127
      %s145 = sphi 0, %s145
      %s147 = sphi 0, %s145
      %s148 = sphi 0, %s147
      %s162 = sphi 0, %s148
      %s166 = sphi 0, %s166
      %s168 = sphi 0, %s166
      %s169 = sphi 0, %s168
      %s183 = sphi 0, %s169
      %s187 = sphi 0, %s187
      %s189 = sphi 0, %s187
      %s190 = sphi 0, %s189
      %s204 = sphi 0, %s190
      %s208 = sphi 0, %s208
      %s210 = sphi 0, %s208
      %s211 = sphi 0, %s210
      %s225 = sphi 0, %s211
      %s229 = sphi 0, %s229
      %s231 = sphi 0, %s229
      %s232 = sphi 0, %s231
      %s246 = sphi 0, %s232
      %s252 = sphi 0, %s254
      %s255 = sphi 0, %s252
      %s256 = sphi 0, %s255
      %s272 = sphi 0, %s256
      %s278 = sphi 0, %s280
      %s281 = sphi 0, %s278
      %s282 = sphi 0, %s281
      %s298 = sphi 0, %s282
    $region4: #{vae_forward.1} parent=1 // loop_header_branch
      %25 = sbr.rel (%p23) target = $region8
    $region5: #{vae_forward.1} parent=1 // loop_body
      %s27 = ssub.s32 %s22, 1
      %s28 = ssub.s32 %s22, 2
      %s29 = sadd.s32 %s22, 1
      %s30 = ssub.s32 %s22, %s29
      %p31 = scmp.eq.s32.totalorder %s30, 0
      %s33 = sadd.s32 %s32, 1
      %s34 = scalar_select %p31, %s32, %s33
      %p37 = pneg %p31
      %p38 = scmp.eq.s32.totalorder %s22, 1
      %p39 = por %p37, %p38
      %p40 = scmp.ne.s32.totalorder %s32, %s35
      %p41 = scmp.eq.s32.totalorder %s22, 0
      %p42 = por %p40, %p41
      %p43 = scmp.ne.s32.totalorder %s32, %s35
      %p44 = scmp.eq.s32.totalorder %s27, 1
      %p45 = por %p43, %p44
      %p46 = scmp.ne.s32.totalorder %s35, %s36
      %p47 = scmp.eq.s32.totalorder %s27, 0
      %p48 = por %p46, %p47
      %p49 = scmp.ne.s32.totalorder %s35, %s36
      %p50 = scmp.eq.s32.totalorder %s28, 1
      %p51 = por %p49, %p50
      %p53 = scmp.ne.s32.totalorder %s36, %s52
      %p54 = scmp.eq.s32.totalorder %s28, 0
      %p55 = por %p53, %p54
      %s56 = ssub.s32 %s22, %s29
      %p57 = scmp.eq.s32.totalorder %s56, 0
      %s59 = sadd.s32 %s58, 1
      %s60 = scalar_select %p57, %s58, %s59
      %p63 = pneg %p57
      %p64 = scmp.eq.s32.totalorder %s22, 1
      %p65 = por %p63, %p64
      %p66 = scmp.ne.s32.totalorder %s58, %s61
      %p67 = scmp.eq.s32.totalorder %s22, 0
      %p68 = por %p66, %p67
      %p69 = scmp.ne.s32.totalorder %s58, %s61
      %p70 = scmp.eq.s32.totalorder %s27, 1
      %p71 = por %p69, %p70
      %p72 = scmp.ne.s32.totalorder %s61, %s62
      %p73 = scmp.eq.s32.totalorder %s27, 0
      %p74 = por %p72, %p73
      %p75 = scmp.ne.s32.totalorder %s61, %s62
      %p76 = scmp.eq.s32.totalorder %s28, 1
      %p77 = por %p75, %p76
      %p79 = scmp.ne.s32.totalorder %s62, %s78
      %p80 = scmp.eq.s32.totalorder %s28, 0
      %p81 = por %p79, %p80
      %s83 = sadd.s32 %s82, 1
      %p86 = scmp.eq.s32.totalorder %s22, 1
      %p87 = scmp.ne.s32.totalorder %s82, %s84
      %p88 = scmp.eq.s32.totalorder %s22, 0
      %p89 = por %p87, %p88
      %p90 = scmp.ne.s32.totalorder %s82, %s84
      %p91 = scmp.eq.s32.totalorder %s27, 1
      %p92 = por %p90, %p91
      %p93 = scmp.ne.s32.totalorder %s84, %s85
      %p94 = scmp.eq.s32.totalorder %s27, 0
      %p95 = por %p93, %p94
      %p96 = scmp.ne.s32.totalorder %s84, %s85
      %p97 = scmp.eq.s32.totalorder %s28, 1
      %p98 = por %p96, %p97
      %p100 = scmp.ne.s32.totalorder %s85, %s99
      %p101 = scmp.eq.s32.totalorder %s28, 0
      %p102 = por %p100, %p101
      %s104 = sadd.s32 %s103, 1
      %p107 = scmp.eq.s32.totalorder %s22, 1
      %p108 = scmp.ne.s32.totalorder %s103, %s105
      %p109 = scmp.eq.s32.totalorder %s22, 0
      %p110 = por %p108, %p109
      %p111 = scmp.ne.s32.totalorder %s103, %s105
      %p112 = scmp.eq.s32.totalorder %s27, 1
      %p113 = por %p111, %p112
      %p114 = scmp.ne.s32.totalorder %s105, %s106
      %p115 = scmp.eq.s32.totalorder %s27, 0
      %p116 = por %p114, %p115
      %p117 = scmp.ne.s32.totalorder %s105, %s106
      %p118 = scmp.eq.s32.totalorder %s28, 1
      %p119 = por %p117, %p118
      %p121 = scmp.ne.s32.totalorder %s106, %s120
      %p122 = scmp.eq.s32.totalorder %s28, 0
      %p123 = por %p121, %p122
      %s125 = sadd.s32 %s124, 1
      %p128 = scmp.eq.s32.totalorder %s22, 1
      %p129 = scmp.ne.s32.totalorder %s124, %s126
      %p130 = scmp.eq.s32.totalorder %s22, 0
      %p131 = por %p129, %p130
      %p132 = scmp.ne.s32.totalorder %s124, %s126
      %p133 = scmp.eq.s32.totalorder %s27, 1
      %p134 = por %p132, %p133
      %p135 = scmp.ne.s32.totalorder %s126, %s127
      %p136 = scmp.eq.s32.totalorder %s27, 0
      %p137 = por %p135, %p136
      %p138 = scmp.ne.s32.totalorder %s126, %s127
      %p139 = scmp.eq.s32.totalorder %s28, 1
      %p140 = por %p138, %p139
      %p142 = scmp.ne.s32.totalorder %s127, %s141
      %p143 = scmp.eq.s32.totalorder %s28, 0
      %p144 = por %p142, %p143
      %s146 = sadd.s32 %s145, 1
      %p149 = scmp.eq.s32.totalorder %s22, 1
      %p150 = scmp.ne.s32.totalorder %s145, %s147
      %p151 = scmp.eq.s32.totalorder %s22, 0
      %p152 = por %p150, %p151
      %p153 = scmp.ne.s32.totalorder %s145, %s147
      %p154 = scmp.eq.s32.totalorder %s27, 1
      %p155 = por %p153, %p154
      %p156 = scmp.ne.s32.totalorder %s147, %s148
      %p157 = scmp.eq.s32.totalorder %s27, 0
      %p158 = por %p156, %p157
      %p159 = scmp.ne.s32.totalorder %s147, %s148
      %p160 = scmp.eq.s32.totalorder %s28, 1
      %p161 = por %p159, %p160
      %p163 = scmp.ne.s32.totalorder %s148, %s162
      %p164 = scmp.eq.s32.totalorder %s28, 0
      %p165 = por %p163, %p164
      %s167 = sadd.s32 %s166, 1
      %p170 = scmp.eq.s32.totalorder %s22, 1
      %p171 = scmp.ne.s32.totalorder %s166, %s168
      %p172 = scmp.eq.s32.totalorder %s22, 0
      %p173 = por %p171, %p172
      %p174 = scmp.ne.s32.totalorder %s166, %s168
      %p175 = scmp.eq.s32.totalorder %s27, 1
      %p176 = por %p174, %p175
      %p177 = scmp.ne.s32.totalorder %s168, %s169
      %p178 = scmp.eq.s32.totalorder %s27, 0
      %p179 = por %p177, %p178
      %p180 = scmp.ne.s32.totalorder %s168, %s169
      %p181 = scmp.eq.s32.totalorder %s28, 1
      %p182 = por %p180, %p181
      %p184 = scmp.ne.s32.totalorder %s169, %s183
      %p185 = scmp.eq.s32.totalorder %s28, 0
      %p186 = por %p184, %p185
      %s188 = sadd.s32 %s187, 1
      %p191 = scmp.eq.s32.totalorder %s22, 1
      %p192 = scmp.ne.s32.totalorder %s187, %s189
      %p193 = scmp.eq.s32.totalorder %s22, 0
      %p194 = por %p192, %p193
      %p195 = scmp.ne.s32.totalorder %s187, %s189
      %p196 = scmp.eq.s32.totalorder %s27, 1
      %p197 = por %p195, %p196
      %p198 = scmp.ne.s32.totalorder %s189, %s190
      %p199 = scmp.eq.s32.totalorder %s27, 0
      %p200 = por %p198, %p199
      %p201 = scmp.ne.s32.totalorder %s189, %s190
      %p202 = scmp.eq.s32.totalorder %s28, 1
      %p203 = por %p201, %p202
      %p205 = scmp.ne.s32.totalorder %s190, %s204
      %p206 = scmp.eq.s32.totalorder %s28, 0
      %p207 = por %p205, %p206
      %s209 = sadd.s32 %s208, 1
      %p212 = scmp.eq.s32.totalorder %s22, 1
      %p213 = scmp.ne.s32.totalorder %s208, %s210
      %p214 = scmp.eq.s32.totalorder %s22, 0
      %p215 = por %p213, %p214
      %p216 = scmp.ne.s32.totalorder %s208, %s210
      %p217 = scmp.eq.s32.totalorder %s27, 1
      %p218 = por %p216, %p217
      %p219 = scmp.ne.s32.totalorder %s210, %s211
      %p220 = scmp.eq.s32.totalorder %s27, 0
      %p221 = por %p219, %p220
      %p222 = scmp.ne.s32.totalorder %s210, %s211
      %p223 = scmp.eq.s32.totalorder %s28, 1
      %p224 = por %p222, %p223
      %p226 = scmp.ne.s32.totalorder %s211, %s225
      %p227 = scmp.eq.s32.totalorder %s28, 0
      %p228 = por %p226, %p227
      %s230 = sadd.s32 %s229, 1
      %p233 = scmp.eq.s32.totalorder %s22, 1
      %p234 = scmp.ne.s32.totalorder %s229, %s231
      %p235 = scmp.eq.s32.totalorder %s22, 0
      %p236 = por %p234, %p235
      %p237 = scmp.ne.s32.totalorder %s229, %s231
      %p238 = scmp.eq.s32.totalorder %s27, 1
      %p239 = por %p237, %p238
      %p240 = scmp.ne.s32.totalorder %s231, %s232
      %p241 = scmp.eq.s32.totalorder %s27, 0
      %p242 = por %p240, %p241
      %p243 = scmp.ne.s32.totalorder %s231, %s232
      %p244 = scmp.eq.s32.totalorder %s28, 1
      %p245 = por %p243, %p244
      %p247 = scmp.ne.s32.totalorder %s232, %s246
      %p248 = scmp.eq.s32.totalorder %s28, 0
      %p249 = por %p247, %p248
      %s250 = ssub.s32 %s22, %s29
      %p251 = scmp.eq.s32.totalorder %s250, 0
      %s253 = sadd.s32 %s252, 1
      %s254 = scalar_select %p251, %s252, %s253
      %p257 = pneg %p251
      %p258 = scmp.eq.s32.totalorder %s22, 1
      %p259 = por %p257, %p258
      %p260 = scmp.ne.s32.totalorder %s252, %s255
      %p261 = scmp.eq.s32.totalorder %s22, 0
      %p262 = por %p260, %p261
      %p263 = scmp.ne.s32.totalorder %s252, %s255
      %p264 = scmp.eq.s32.totalorder %s27, 1
      %p265 = por %p263, %p264
      %p266 = scmp.ne.s32.totalorder %s255, %s256
      %p267 = scmp.eq.s32.totalorder %s27, 0
      %p268 = por %p266, %p267
      %p269 = scmp.ne.s32.totalorder %s255, %s256
      %p270 = scmp.eq.s32.totalorder %s28, 1
      %p271 = por %p269, %p270
      %p273 = scmp.ne.s32.totalorder %s256, %s272
      %p274 = scmp.eq.s32.totalorder %s28, 0
      %p275 = por %p273, %p274
      %s276 = ssub.s32 %s22, %s29
      %p277 = scmp.eq.s32.totalorder %s276, 0
      %s279 = sadd.s32 %s278, 1
      %s280 = scalar_select %p277, %s278, %s279
      %p283 = pneg %p277
      %p284 = scmp.eq.s32.totalorder %s22, 1
      %p285 = por %p283, %p284
      %p286 = scmp.ne.s32.totalorder %s278, %s281
      %p287 = scmp.eq.s32.totalorder %s22, 0
      %p288 = por %p286, %p287
      %p289 = scmp.ne.s32.totalorder %s278, %s281
      %p290 = scmp.eq.s32.totalorder %s27, 1
      %p291 = por %p289, %p290
      %p292 = scmp.ne.s32.totalorder %s281, %s282
      %p293 = scmp.eq.s32.totalorder %s27, 0
      %p294 = por %p292, %p293
      %p295 = scmp.ne.s32.totalorder %s281, %s282
      %p296 = scmp.eq.s32.totalorder %s28, 1
      %p297 = por %p295, %p296
      %p299 = scmp.ne.s32.totalorder %s282, %s298
      %p300 = scmp.eq.s32.totalorder %s28, 0
      %p301 = por %p299, %p300
      %p302 = scmp.le.s32.totalorder 1, %s22
      %p303 = scmp.lt.s32.totalorder %s22, 3
      %p304 = pnand %p302, %p303
      %p305 = pneg %p304
      // Predicated region
      $region9: #{vae_forward.1} parent=5 // pred_check
        _
      $region10: #{vae_forward.1} parent=5 // pred_check_branch
        %307 = sbr.rel (%p304) target = $region12
      $region11: #{vae_forward.1} parent=5 // pred_region
        %s308 = ssub.s32 %s22, 1
        // Predicated region
        $region13: #{vae_forward.1} parent=11 // pred_check
          %p309 = pneg %p95
        $region14: #{vae_forward.1} parent=11 // pred_check_branch
          %311 = sbr.rel (%p309) target = $region16
        $region15: #{vae_forward.1} parent=11 // pred_region
          _
        $region16: #{vae_forward.1} parent=11 // pred_fallthru
          _
        // Predicated region
        $region17: #{vae_forward.1} parent=11 // pred_check
          %p312 = pneg %p116
        $region18: #{vae_forward.1} parent=11 // pred_check_branch
          %314 = sbr.rel (%p312) target = $region20
        $region19: #{vae_forward.1} parent=11 // pred_region
          _
        $region20: #{vae_forward.1} parent=11 // pred_fallthru
          _
        // Predicated region
        $region21: #{vae_forward.1} parent=11 // pred_check
          %p315 = pneg %p137
        $region22: #{vae_forward.1} parent=11 // pred_check_branch
          %317 = sbr.rel (%p315) target = $region24
        $region23: #{vae_forward.1} parent=11 // pred_region
          _
        $region24: #{vae_forward.1} parent=11 // pred_fallthru
          _
        // Predicated region
        $region25: #{vae_forward.1} parent=11 // pred_check
          %p318 = pneg %p158
        $region26: #{vae_forward.1} parent=11 // pred_check_branch
          %320 = sbr.rel (%p318) target = $region28
        $region27: #{vae_forward.1} parent=11 // pred_region
          _
        $region28: #{vae_forward.1} parent=11 // pred_fallthru
          _
        // Predicated region
        $region29: #{vae_forward.1} parent=11 // pred_check
          %p321 = pneg %p179
        $region30: #{vae_forward.1} parent=11 // pred_check_branch
          %323 = sbr.rel (%p321) target = $region32
        $region31: #{vae_forward.1} parent=11 // pred_region
          _
        $region32: #{vae_forward.1} parent=11 // pred_fallthru
          _
        // Predicated region
        $region33: #{vae_forward.1} parent=11 // pred_check
          %p324 = pneg %p200
        $region34: #{vae_forward.1} parent=11 // pred_check_branch
          %326 = sbr.rel (%p324) target = $region36
        $region35: #{vae_forward.1} parent=11 // pred_region
          _
        $region36: #{vae_forward.1} parent=11 // pred_fallthru
          _
        // Predicated region
        $region37: #{vae_forward.1} parent=11 // pred_check
          %p327 = pneg %p221
        $region38: #{vae_forward.1} parent=11 // pred_check_branch
          %329 = sbr.rel (%p327) target = $region40
        $region39: #{vae_forward.1} parent=11 // pred_region
          %s331 = ssub.s32 2048, 2048
          %332 = vsyncadd [#allocation3], %s331
          %s333 = sshll.u32 [#allocation2], 4
          %s334 = int_to_ptr.vmem [resolvable:$true] %s333
          %339 = dma.hbm_to_vmem [thread:$0]  %s8, 2048, %s334, [#allocation3], 64, 64, 4
        $region40: #{vae_forward.1} parent=11 // pred_fallthru
          _
        // Predicated region
        $region41: #{vae_forward.1} parent=11 // pred_check
          %p340 = pneg %p242
        $region42: #{vae_forward.1} parent=11 // pred_check_branch
          %342 = sbr.rel (%p340) target = $region44
        $region43: #{vae_forward.1} parent=11 // pred_region
          _
        $region44: #{vae_forward.1} parent=11 // pred_fallthru
          _
      $region12: #{vae_forward.1} parent=5 // pred_fallthru
        _
      %p343 = scmp.lt.s32.totalorder %s22, 2
      // Predicated region
      $region45: #{vae_forward.1} parent=5 // pred_check
        %p344 = pneg %p343
      $region46: #{vae_forward.1} parent=5 // pred_check_branch
        %346 = sbr.rel (%p344) target = $region48
      $region47: #{vae_forward.1} parent=5 // pred_region
        // Predicated region
        $region49: #{vae_forward.1} parent=47 // pred_check
          %p347 = pneg %p42
        $region50: #{vae_forward.1} parent=47 // pred_check_branch
          %349 = sbr.rel (%p347) target = $region52
        $region51: #{vae_forward.1} parent=47 // pred_region
          %s350 = smul.u32 16, %s22
          %s351 = ssub.s32 25, %s350
          %p352 = scmp.lt.s32.totalorder %s351, 16
          %s353 = scalar_select %p352, %s351, 16
          %s354 = smul.u32 128, %s353
          %p355 = scmp.lt.s32.totalorder %s350, 24
          %s356 = scalar_select %p355, %s350, 24
          %s357 = smul.addr %s356, 8
          %s358 = scalar_lea.vmem %s0, %s357
          %s359 = smul.u32 16, %s22
          %s360 = ssub.s32 25, %s359
          %p361 = scmp.lt.s32.totalorder %s360, 16
          %s362 = scalar_select %p361, %s360, 16
          %s363 = smul.u32 128, %s362
        $region52: #{vae_forward.1} parent=47 // pred_fallthru
          _
        // Predicated region
        $region53: #{vae_forward.1} parent=47 // pred_check
          %p364 = pneg %p68
        $region54: #{vae_forward.1} parent=47 // pred_check_branch
          %366 = sbr.rel (%p364) target = $region56
        $region55: #{vae_forward.1} parent=47 // pred_region
          %s367 = smul.u32 16, %s22
          %s368 = ssub.s32 25, %s367
          %p369 = scmp.lt.s32.totalorder %s368, 16
          %s370 = scalar_select %p369, %s368, 16
          %s371 = smul.u32 128, %s370
          %p372 = scmp.lt.s32.totalorder %s367, 24
          %s373 = scalar_select %p372, %s367, 24
          %s374 = smul.addr %s373, 8
          %s375 = scalar_lea.vmem %s1, %s374
          %s376 = smul.u32 16, %s22
          %s377 = ssub.s32 25, %s376
          %p378 = scmp.lt.s32.totalorder %s377, 16
          %s379 = scalar_select %p378, %s377, 16
          %s380 = smul.u32 128, %s379
        $region56: #{vae_forward.1} parent=47 // pred_fallthru
          _
      $region48: #{vae_forward.1} parent=5 // pred_fallthru
        _
      %p381 = scmp.le.s32.totalorder 1, %s22
      %p382 = scmp.lt.s32.totalorder %s22, 3
      %p383 = pnand %p381, %p382
      %p384 = pneg %p383
      // Predicated region
      $region57: #{vae_forward.1} parent=5 // pred_check
        _
      $region58: #{vae_forward.1} parent=5 // pred_check_branch
        %386 = sbr.rel (%p383) target = $region60
      $region59: #{vae_forward.1} parent=5 // pred_region
        %s387 = ssub.s32 %s22, 1
        // Predicated region
        $region61: #{vae_forward.1} parent=59 // pred_check
          %p388 = pneg %p221
        $region62: #{vae_forward.1} parent=59 // pred_check_branch
          %390 = sbr.rel (%p388) target = $region64
        $region63: #{vae_forward.1} parent=59 // pred_region
          %391 = dma.done [#allocation3], 2048
        $region64: #{vae_forward.1} parent=59 // pred_fallthru
          _
        %s392 = smul.u32 16, %s27
        %s393 = ssub.s32 25, %s392
        %p394 = scmp.lt.s32.totalorder %s393, 16
        %s395 = scalar_select %p394, %s393, 16
        %s396 = smul.u32 128, %s395
        %p397 = scmp.lt.s32.totalorder %s392, 24
        %s398 = scalar_select %p397, %s392, 24
        %s399 = smul.addr %s398, 8
        %s400 = scalar_lea.vmem %s0, %s399
        %p401 = pneg %p48
        %p402 = pneg %p45
        %s403 = smul.u32 16, %s27
        %s404 = ssub.s32 25, %s403
        %p405 = scmp.lt.s32.totalorder %s404, 16
        %s406 = scalar_select %p405, %s404, 16
        %s407 = smul.u32 128, %s406
        %p408 = scmp.lt.s32.totalorder %s403, 24
        %s409 = scalar_select %p408, %s403, 24
        %s410 = smul.addr %s409, 8
        %s411 = scalar_lea.vmem %s1, %s410
        %p412 = pneg %p74
        %p413 = pneg %p71
        %p414 = pneg %p95
        %p415 = pneg %p92
        %p416 = pneg %p116
        %p417 = pneg %p113
        %p418 = pneg %p137
        %p419 = pneg %p134
        %p420 = pneg %p158
        %p421 = pneg %p155
        %p422 = pneg %p179
        %p423 = pneg %p176
        %p424 = pneg %p200
        %p425 = pneg %p197
        %p426 = pneg %p221
        %p427 = pneg %p218
        %p428 = pneg %p242
        %p429 = pneg %p239
        %p430 = pneg %p268
        %p431 = pneg %p265
        %s432 = sand.u32 %s255, 1
        %s433 = scalar_lea.sflag [#allocation4], %s432
        %s434 = sand.u32 %s255, 1
        %s435 = smul.addr %s434, 128
        %s436 = scalar_lea.vmem [#allocation5], %s435
        %p437 = pneg %p294
        %p438 = pneg %p291
        %s439 = sand.u32 %s281, 1
        %s440 = sand.u32 %s281, 1
        %s441 = smul.addr %s440, 256
        %s442 = scalar_lea.vmem [#allocation6], %s441
        %s443 = smul.u32 16, %s27
        %s444 = ssub.s32 25, %s443
        %p445 = scmp.lt.s32.totalorder %s444, 16
        %s446 = scalar_select %p445, %s444, 16
        %s447 = smul.u32 128, %s446
        %p448 = scmp.lt.s32.totalorder %s443, 24
        %s449 = scalar_select %p448, %s443, 24
        %s450 = smul.addr %s449, 8
        %s451 = scalar_lea.vmem %s0, %s450
        %s452 = smul.u32 16, %s27
        %s453 = ssub.s32 25, %s452
        %p454 = scmp.lt.s32.totalorder %s453, 16
        %s455 = scalar_select %p454, %s453, 16
        %s456 = smul.u32 128, %s455
        %s457 = smul.u32 16, %s27
        %s458 = ssub.s32 25, %s457
        %p459 = scmp.lt.s32.totalorder %s458, 16
        %s460 = scalar_select %p459, %s458, 16
        %s461 = smul.u32 128, %s460
        %p462 = scmp.lt.s32.totalorder %s457, 24
        %s463 = scalar_select %p462, %s457, 24
        %s464 = smul.addr %s463, 8
        %s465 = scalar_lea.vmem %s1, %s464
        %s466 = smul.u32 16, %s27
        %s467 = ssub.s32 25, %s466
        %p468 = scmp.lt.s32.totalorder %s467, 16
        %s469 = scalar_select %p468, %s467, 16
        %s470 = smul.u32 128, %s469
        %s471 = smul.u32 16, %s27
        %s472 = ssub.s32 25, %s471
        %p473 = scmp.lt.s32.totalorder %s472, 16
        %s474 = scalar_select %p473, %s472, 16
        %s475 = smul.u32 128, %s474
        %s476 = smul.u32 16, %s27
        %s477 = ssub.s32 25, %s476
        %p478 = scmp.lt.s32.totalorder %s477, 16
        %s479 = scalar_select %p478, %s477, 16
        %s480 = smul.u32 128, %s479
        %s481 = smul.u32 %s480, 2
        %v483 = vld [vmem:[%s451] sm:$0xff]
        %v484 = vld [vmem:[%s451 + $0x8] sm:$0xff]
        %v485 = vld [vmem:[%s451 + $0x10] sm:$0xff]
        %v486 = vld [vmem:[%s451 + $0x18] sm:$0xff]
        %v487 = vld [vmem:[%s451 + $0x20] sm:$0xff]
        %v488 = vld [vmem:[%s451 + $0x28] sm:$0xff]
        %v489 = vld [vmem:[%s451 + $0x30] sm:$0xff]
        %v490 = vld [vmem:[%s451 + $0x38] sm:$0xff]
        %v491 = vld [vmem:[%s451 + $0x40] sm:$0xff]
        %v492 = vld [vmem:[%s451 + $0x48] sm:$0xff]
        %v493 = vld [vmem:[%s451 + $0x50] sm:$0xff]
        %v494 = vld [vmem:[%s451 + $0x58] sm:$0xff]
        %v495 = vld [vmem:[%s451 + $0x60] sm:$0xff]
        %v496 = vld [vmem:[%s451 + $0x68] sm:$0xff]
        %v497 = vld [vmem:[%s451 + $0x70] sm:$0xff]
        %v498 = vld [vmem:[%s451 + $0x78] sm:$0xff]
        %v499 = vpack.c.bf16 %v484, %v483
        %v500 = vpack.c.bf16 %v486, %v485
        %v501 = vpack.c.bf16 %v488, %v487
        %v502 = vpack.c.bf16 %v490, %v489
        %v503 = vpack.c.bf16 %v492, %v491
        %v504 = vpack.c.bf16 %v494, %v493
        %v505 = vpack.c.bf16 %v496, %v495
        %v506 = vpack.c.bf16 %v498, %v497
        %v507 = vld [vmem:[%s465] sm:$0xff]
        %v508 = vld [vmem:[%s465 + $0x8] sm:$0xff]
        %v509 = vld [vmem:[%s465 + $0x10] sm:$0xff]
        %v510 = vld [vmem:[%s465 + $0x18] sm:$0xff]
        %v511 = vld [vmem:[%s465 + $0x20] sm:$0xff]
        %v512 = vld [vmem:[%s465 + $0x28] sm:$0xff]
        %v513 = vld [vmem:[%s465 + $0x30] sm:$0xff]
        %v514 = vld [vmem:[%s465 + $0x38] sm:$0xff]
        %v515 = vld [vmem:[%s465 + $0x40] sm:$0xff]
        %v516 = vld [vmem:[%s465 + $0x48] sm:$0xff]
        %v517 = vld [vmem:[%s465 + $0x50] sm:$0xff]
        %v518 = vld [vmem:[%s465 + $0x58] sm:$0xff]
        %v519 = vld [vmem:[%s465 + $0x60] sm:$0xff]
        %v520 = vld [vmem:[%s465 + $0x68] sm:$0xff]
        %v521 = vld [vmem:[%s465 + $0x70] sm:$0xff]
        %v522 = vld [vmem:[%s465 + $0x78] sm:$0xff]
        %v523 = vld [vmem:[%s2] sm:$0xff]
        %v524 = vld [vmem:[%s2 + $0x8] sm:$0xff]
        %v525 = vld [vmem:[%s2 + $0x10] sm:$0xff]
        %v526 = vld [vmem:[%s2 + $0x18] sm:$0xff]
        %v527 = vld [vmem:[%s2 + $0x20] sm:$0xff]
        %v528 = vld [vmem:[%s2 + $0x28] sm:$0xff]
        %v529 = vld [vmem:[%s2 + $0x30] sm:$0xff]
        %v530 = vld [vmem:[%s2 + $0x38] sm:$0xff]
        %v531 = vld [vmem:[%s2 + $0x40] sm:$0xff]
        %v532 = vld [vmem:[%s2 + $0x48] sm:$0xff]
        %v533 = vld [vmem:[%s2 + $0x50] sm:$0xff]
        %v534 = vld [vmem:[%s2 + $0x58] sm:$0xff]
        %v535 = vld [vmem:[%s2 + $0x60] sm:$0xff]
        %v536 = vld [vmem:[%s2 + $0x68] sm:$0xff]
        %v537 = vld [vmem:[%s2 + $0x70] sm:$0xff]
        %v538 = vld [vmem:[%s2 + $0x78] sm:$0xff]
        %v539 = vld [vmem:[%s3] sm:$0x3]
        %v541 = vlaneseq
        %v542 = vshrl.u32 %v541, 7
        %v543 = vsub.s32 0, %v542
        %v544 = vrot.slane %v539, %v543
        %v545 = vlaneseq
        %v546 = vshrl.u32 %v545, 7
        %v547 = vsub.s32 1, %v546
        %v548 = vrot.slane %v539, %v547
        %v567 = vunpack.c.l.b16 %v523
        %v568 = vunpack.c.h.b16 %v523
        %v569 = vunpack.c.l.b16 %v524
        %v570 = vunpack.c.h.b16 %v524
        %v571 = vunpack.c.l.b16 %v525
        %v572 = vunpack.c.h.b16 %v525
        %v573 = vunpack.c.l.b16 %v526
        %v574 = vunpack.c.h.b16 %v526
        %v575 = vunpack.c.l.b16 %v527
        %v576 = vunpack.c.h.b16 %v527
        %v577 = vunpack.c.l.b16 %v528
        %v578 = vunpack.c.h.b16 %v528
        %v579 = vunpack.c.l.b16 %v529
        %v580 = vunpack.c.h.b16 %v529
        %v581 = vunpack.c.l.b16 %v530
        %v582 = vunpack.c.h.b16 %v530
        %v583 = vunpack.c.l.b16 %v531
        %v584 = vunpack.c.h.b16 %v531
        %v585 = vunpack.c.l.b16 %v532
        %v586 = vunpack.c.h.b16 %v532
        %v587 = vunpack.c.l.b16 %v533
        %v588 = vunpack.c.h.b16 %v533
        %v589 = vunpack.c.l.b16 %v534
        %v590 = vunpack.c.h.b16 %v534
        %v591 = vunpack.c.l.b16 %v535
        %v592 = vunpack.c.h.b16 %v535
        %v593 = vunpack.c.l.b16 %v536
        %v594 = vunpack.c.h.b16 %v536
        %v595 = vunpack.c.l.b16 %v537
        %v596 = vunpack.c.h.b16 %v537
        %v597 = vunpack.c.l.b16 %v538
        %v598 = vunpack.c.h.b16 %v538
        %v599 = vpack.c.b16 %v569, %v567
        %v600 = vpack.c.b16 %v570, %v568
        %v601 = vpack.c.b16 %v573, %v571
        %v602 = vpack.c.b16 %v574, %v572
        %v603 = vpack.c.b16 %v577, %v575
        %v604 = vpack.c.b16 %v578, %v576
        %v605 = vpack.c.b16 %v581, %v579
        %v606 = vpack.c.b16 %v582, %v580
        %v607 = vpack.c.b16 %v585, %v583
        %v608 = vpack.c.b16 %v586, %v584
        %v609 = vpack.c.b16 %v589, %v587
        %v610 = vpack.c.b16 %v590, %v588
        %v611 = vpack.c.b16 %v593, %v591
        %v612 = vpack.c.b16 %v594, %v592
        %v613 = vpack.c.b16 %v597, %v595
        %v614 = vpack.c.b16 %v598, %v596
        %631 = vmatprep.subr.bf16.mxu0 %v614
        %632 = vmatpush1.bf16.msra.mxu0 %v613
        %633 = vmatprep.subr.bf16.mxu0 %v612
        %634 = vmatpush1.bf16.msra.mxu0 %v611
        %635 = vmatprep.subr.bf16.mxu0 %v610
        %636 = vmatpush1.bf16.msra.mxu0 %v609
        %637 = vmatprep.subr.bf16.mxu0 %v608
        %638 = vmatpush1.bf16.msra.mxu0 %v607
        %639 = vmatprep.subr.bf16.mxu0 %v606
        %640 = vmatpush1.bf16.msra.mxu0 %v605
        %641 = vmatprep.subr.bf16.mxu0 %v604
        %642 = vmatpush1.bf16.msra.mxu0 %v603
        %643 = vmatprep.subr.bf16.mxu0 %v602
        %644 = vmatpush1.bf16.msra.mxu0 %v601
        %645 = vmatprep.subr.bf16.mxu0 %v600
        %646 = vmatpush1.bf16.msra.mxu0 %v599
        %647 = vmatprep.subr.bf16.mxu0 0
        %648 = vmatpush2.bf16.msra.mxu0 0
        %649 = vmatprep.subr.bf16.mxu0 0
        %650 = vmatpush2.bf16.msra.mxu0 0
        %651 = vmatprep.subr.bf16.mxu0 0
        %652 = vmatpush2.bf16.msra.mxu0 0
        %653 = vmatprep.subr.bf16.mxu0 0
        %654 = vmatpush2.bf16.msra.mxu0 0
        %655 = vmatprep.subr.bf16.mxu0 0
        %656 = vmatpush2.bf16.msra.mxu0 0
        %657 = vmatprep.subr.bf16.mxu0 0
        %658 = vmatpush2.bf16.msra.mxu0 0
        %659 = vmatprep.subr.bf16.mxu0 0
        %660 = vmatpush2.bf16.msra.mxu0 0
        %661 = vmatprep.subr.bf16.mxu0 0
        %662 = vmatpush2.bf16.msra.mxu0 0
        %663 = vmatprep.mubr.bf16.mxu0 0
        %664 = vmatmul.mubr.bf16.gmra.mxu0 %v499
        %v665 = vpop.f32.mrf.mxu0
        %v666 = vadd.f32 %v544, %v665
        %v667 = vpop.f32.mrf.mxu0
        %v668 = vadd.f32 %v548, %v667
        %v669 = vpop.f32.mrf.mxu0
        %v670 = vadd.f32 %v544, %v669
        %v671 = vpop.f32.mrf.mxu0
        %v672 = vadd.f32 %v548, %v671
        %673 = vmatprep.mubr.bf16.mxu0 0
        %674 = vmatmul.mubr.bf16.gmra.mxu0 %v500
        %v675 = vpop.f32.mrf.mxu0
        %v676 = vadd.f32 %v544, %v675
        %v677 = vpop.f32.mrf.mxu0
        %v678 = vadd.f32 %v548, %v677
        %v679 = vpop.f32.mrf.mxu0
        %v680 = vadd.f32 %v544, %v679
        %v681 = vpop.f32.mrf.mxu0
        %v682 = vadd.f32 %v548, %v681
        %683 = vmatprep.mubr.bf16.mxu0 0
        %684 = vmatmul.mubr.bf16.gmra.mxu0 %v501
        %v685 = vpop.f32.mrf.mxu0
        %v686 = vadd.f32 %v544, %v685
        %v687 = vpop.f32.mrf.mxu0
        %v688 = vadd.f32 %v548, %v687
        %v689 = vpop.f32.mrf.mxu0
        %v690 = vadd.f32 %v544, %v689
        %v691 = vpop.f32.mrf.mxu0
        %v692 = vadd.f32 %v548, %v691
        %693 = vmatprep.mubr.bf16.mxu0 0
        %694 = vmatmul.mubr.bf16.gmra.mxu0 %v502
        %v695 = vpop.f32.mrf.mxu0
        %v696 = vadd.f32 %v544, %v695
        %v697 = vpop.f32.mrf.mxu0
        %v698 = vadd.f32 %v548, %v697
        %v699 = vpop.f32.mrf.mxu0
        %v700 = vadd.f32 %v544, %v699
        %v701 = vpop.f32.mrf.mxu0
        %v702 = vadd.f32 %v548, %v701
        %703 = vmatprep.mubr.bf16.mxu0 0
        %704 = vmatmul.mubr.bf16.gmra.mxu0 %v503
        %v705 = vpop.f32.mrf.mxu0
        %v706 = vadd.f32 %v544, %v705
        %v707 = vpop.f32.mrf.mxu0
        %v708 = vadd.f32 %v548, %v707
        %v709 = vpop.f32.mrf.mxu0
        %v710 = vadd.f32 %v544, %v709
        %v711 = vpop.f32.mrf.mxu0
        %v712 = vadd.f32 %v548, %v711
        %713 = vmatprep.mubr.bf16.mxu0 0
        %714 = vmatmul.mubr.bf16.gmra.mxu0 %v504
        %v715 = vpop.f32.mrf.mxu0
        %v716 = vadd.f32 %v544, %v715
        %v717 = vpop.f32.mrf.mxu0
        %v718 = vadd.f32 %v548, %v717
        %v719 = vpop.f32.mrf.mxu0
        %v720 = vadd.f32 %v544, %v719
        %v721 = vpop.f32.mrf.mxu0
        %v722 = vadd.f32 %v548, %v721
        %723 = vmatprep.mubr.bf16.mxu0 0
        %724 = vmatmul.mubr.bf16.gmra.mxu0 %v505
        %v725 = vpop.f32.mrf.mxu0
        %v726 = vadd.f32 %v544, %v725
        %v727 = vpop.f32.mrf.mxu0
        %v728 = vadd.f32 %v548, %v727
        %v729 = vpop.f32.mrf.mxu0
        %v730 = vadd.f32 %v544, %v729
        %v731 = vpop.f32.mrf.mxu0
        %v732 = vadd.f32 %v548, %v731
        %733 = vmatprep.mubr.bf16.mxu0 0
        %734 = vmatmul.mubr.bf16.gmra.mxu0 %v506
        %v735 = vpop.f32.mrf.mxu0
        %v736 = vadd.f32 %v544, %v735
        %v737 = vpop.f32.mrf.mxu0
        %v738 = vadd.f32 %v548, %v737
        %v739 = vpop.f32.mrf.mxu0
        %v740 = vadd.f32 %v544, %v739
        %v741 = vpop.f32.mrf.mxu0
        %v742 = vadd.f32 %v548, %v741
        %743 = vdwg.mxu0
        %v744 = vmax.f32 %v666, 0.0
        %v745 = vmax.f32 %v668, 0.0
        %v746 = vmax.f32 %v670, 0.0
        %v747 = vmax.f32 %v672, 0.0
        %v748 = vmax.f32 %v676, 0.0
        %v749 = vmax.f32 %v678, 0.0
        %v750 = vmax.f32 %v680, 0.0
        %v751 = vmax.f32 %v682, 0.0
        %v752 = vmax.f32 %v686, 0.0
        %v753 = vmax.f32 %v688, 0.0
        %v754 = vmax.f32 %v690, 0.0
        %v755 = vmax.f32 %v692, 0.0
        %v756 = vmax.f32 %v696, 0.0
        %v757 = vmax.f32 %v698, 0.0
        %v758 = vmax.f32 %v700, 0.0
        %v759 = vmax.f32 %v702, 0.0
        %v760 = vmax.f32 %v706, 0.0
        %v761 = vmax.f32 %v708, 0.0
        %v762 = vmax.f32 %v710, 0.0
        %v763 = vmax.f32 %v712, 0.0
        %v764 = vmax.f32 %v716, 0.0
        %v765 = vmax.f32 %v718, 0.0
        %v766 = vmax.f32 %v720, 0.0
        %v767 = vmax.f32 %v722, 0.0
        %v768 = vmax.f32 %v726, 0.0
        %v769 = vmax.f32 %v728, 0.0
        %v770 = vmax.f32 %v730, 0.0
        %v771 = vmax.f32 %v732, 0.0
        %v772 = vmax.f32 %v736, 0.0
        %v773 = vmax.f32 %v738, 0.0
        %v774 = vmax.f32 %v740, 0.0
        %v775 = vmax.f32 %v742, 0.0
        %v776 = vpack.c.bf16 %v746, %v744
        %v777 = vpack.c.bf16 %v747, %v745
        %v778 = vpack.c.bf16 %v750, %v748
        %v779 = vpack.c.bf16 %v751, %v749
        %v780 = vpack.c.bf16 %v754, %v752
        %v781 = vpack.c.bf16 %v755, %v753
        %v782 = vpack.c.bf16 %v758, %v756
        %v783 = vpack.c.bf16 %v759, %v757
        %v784 = vpack.c.bf16 %v762, %v760
        %v785 = vpack.c.bf16 %v763, %v761
        %v786 = vpack.c.bf16 %v766, %v764
        %v787 = vpack.c.bf16 %v767, %v765
        %v788 = vpack.c.bf16 %v770, %v768
        %v789 = vpack.c.bf16 %v771, %v769
        %v790 = vpack.c.bf16 %v774, %v772
        %v791 = vpack.c.bf16 %v775, %v773
        %v792 = vld [vmem:[%s4] sm:$0xff]
        %v793 = vld [vmem:[%s4 + $0x8] sm:$0xff]
        %v794 = vld [vmem:[%s4 + $0x10] sm:$0xff]
        %v795 = vld [vmem:[%s4 + $0x18] sm:$0xff]
        %v796 = vld [vmem:[%s4 + $0x20] sm:$0xff]
        %v797 = vld [vmem:[%s4 + $0x28] sm:$0xff]
        %v798 = vld [vmem:[%s4 + $0x30] sm:$0xff]
        %v799 = vld [vmem:[%s4 + $0x38] sm:$0xff]
        %v800 = vld [vmem:[%s4 + $0x40] sm:$0xff]
        %v801 = vld [vmem:[%s4 + $0x48] sm:$0xff]
        %v802 = vld [vmem:[%s4 + $0x50] sm:$0xff]
        %v803 = vld [vmem:[%s4 + $0x58] sm:$0xff]
        %v804 = vld [vmem:[%s4 + $0x60] sm:$0xff]
        %v805 = vld [vmem:[%s4 + $0x68] sm:$0xff]
        %v806 = vld [vmem:[%s4 + $0x70] sm:$0xff]
        %v807 = vld [vmem:[%s4 + $0x78] sm:$0xff]
        %v808 = vld [vmem:[%s4 + $0x80] sm:$0xff]
        %v809 = vld [vmem:[%s4 + $0x88] sm:$0xff]
        %v810 = vld [vmem:[%s4 + $0x90] sm:$0xff]
        %v811 = vld [vmem:[%s4 + $0x98] sm:$0xff]
        %v812 = vld [vmem:[%s4 + $0xa0] sm:$0xff]
        %v813 = vld [vmem:[%s4 + $0xa8] sm:$0xff]
        %v814 = vld [vmem:[%s4 + $0xb0] sm:$0xff]
        %v815 = vld [vmem:[%s4 + $0xb8] sm:$0xff]
        %v816 = vld [vmem:[%s4 + $0xc0] sm:$0xff]
        %v817 = vld [vmem:[%s4 + $0xc8] sm:$0xff]
        %v818 = vld [vmem:[%s4 + $0xd0] sm:$0xff]
        %v819 = vld [vmem:[%s4 + $0xd8] sm:$0xff]
        %v820 = vld [vmem:[%s4 + $0xe0] sm:$0xff]
        %v821 = vld [vmem:[%s4 + $0xe8] sm:$0xff]
        %v822 = vld [vmem:[%s4 + $0xf0] sm:$0xff]
        %v823 = vld [vmem:[%s4 + $0xf8] sm:$0xff]
        %v824 = vld [vmem:[%s5] sm:$0x3]
        %v826 = vlaneseq
        %v827 = vshrl.u32 %v826, 7
        %v828 = vsub.s32 0, %v827
        %v829 = vrot.slane %v824, %v828
        %v830 = vlaneseq
        %v831 = vshrl.u32 %v830, 7
        %v832 = vsub.s32 1, %v831
        %v833 = vrot.slane %v824, %v832
        %v868 = vunpack.c.l.b16 %v792
        %v869 = vunpack.c.h.b16 %v792
        %v870 = vunpack.c.l.b16 %v793
        %v871 = vunpack.c.h.b16 %v793
        %v872 = vunpack.c.l.b16 %v794
        %v873 = vunpack.c.h.b16 %v794
        %v874 = vunpack.c.l.b16 %v795
        %v875 = vunpack.c.h.b16 %v795
        %v876 = vunpack.c.l.b16 %v796
        %v877 = vunpack.c.h.b16 %v796
        %v878 = vunpack.c.l.b16 %v797
        %v879 = vunpack.c.h.b16 %v797
        %v880 = vunpack.c.l.b16 %v798
        %v881 = vunpack.c.h.b16 %v798
        %v882 = vunpack.c.l.b16 %v799
        %v883 = vunpack.c.h.b16 %v799
        %v884 = vunpack.c.l.b16 %v800
        %v885 = vunpack.c.h.b16 %v800
        %v886 = vunpack.c.l.b16 %v801
        %v887 = vunpack.c.h.b16 %v801
        %v888 = vunpack.c.l.b16 %v802
        %v889 = vunpack.c.h.b16 %v802
        %v890 = vunpack.c.l.b16 %v803
        %v891 = vunpack.c.h.b16 %v803
        %v892 = vunpack.c.l.b16 %v804
        %v893 = vunpack.c.h.b16 %v804
        %v894 = vunpack.c.l.b16 %v805
        %v895 = vunpack.c.h.b16 %v805
        %v896 = vunpack.c.l.b16 %v806
        %v897 = vunpack.c.h.b16 %v806
        %v898 = vunpack.c.l.b16 %v807
        %v899 = vunpack.c.h.b16 %v807
        %v900 = vunpack.c.l.b16 %v808
        %v901 = vunpack.c.h.b16 %v808
        %v902 = vunpack.c.l.b16 %v809
        %v903 = vunpack.c.h.b16 %v809
        %v904 = vunpack.c.l.b16 %v810
        %v905 = vunpack.c.h.b16 %v810
        %v906 = vunpack.c.l.b16 %v811
        %v907 = vunpack.c.h.b16 %v811
        %v908 = vunpack.c.l.b16 %v812
        %v909 = vunpack.c.h.b16 %v812
        %v910 = vunpack.c.l.b16 %v813
        %v911 = vunpack.c.h.b16 %v813
        %v912 = vunpack.c.l.b16 %v814
        %v913 = vunpack.c.h.b16 %v814
        %v914 = vunpack.c.l.b16 %v815
        %v915 = vunpack.c.h.b16 %v815
        %v916 = vunpack.c.l.b16 %v816
        %v917 = vunpack.c.h.b16 %v816
        %v918 = vunpack.c.l.b16 %v817
        %v919 = vunpack.c.h.b16 %v817
        %v920 = vunpack.c.l.b16 %v818
        %v921 = vunpack.c.h.b16 %v818
        %v922 = vunpack.c.l.b16 %v819
        %v923 = vunpack.c.h.b16 %v819
        %v924 = vunpack.c.l.b16 %v820
        %v925 = vunpack.c.h.b16 %v820
        %v926 = vunpack.c.l.b16 %v821
        %v927 = vunpack.c.h.b16 %v821
        %v928 = vunpack.c.l.b16 %v822
        %v929 = vunpack.c.h.b16 %v822
        %v930 = vunpack.c.l.b16 %v823
        %v931 = vunpack.c.h.b16 %v823
        %v932 = vpack.c.b16 %v870, %v868
        %v933 = vpack.c.b16 %v871, %v869
        %v934 = vpack.c.b16 %v874, %v872
        %v935 = vpack.c.b16 %v875, %v873
        %v936 = vpack.c.b16 %v878, %v876
        %v937 = vpack.c.b16 %v879, %v877
        %v938 = vpack.c.b16 %v882, %v880
        %v939 = vpack.c.b16 %v883, %v881
        %v940 = vpack.c.b16 %v886, %v884
        %v941 = vpack.c.b16 %v887, %v885
        %v942 = vpack.c.b16 %v890, %v888
        %v943 = vpack.c.b16 %v891, %v889
        %v944 = vpack.c.b16 %v894, %v892
        %v945 = vpack.c.b16 %v895, %v893
        %v946 = vpack.c.b16 %v898, %v896
        %v947 = vpack.c.b16 %v899, %v897
        %v948 = vpack.c.b16 %v902, %v900
        %v949 = vpack.c.b16 %v903, %v901
        %v950 = vpack.c.b16 %v906, %v904
        %v951 = vpack.c.b16 %v907, %v905
        %v952 = vpack.c.b16 %v910, %v908
        %v953 = vpack.c.b16 %v911, %v909
        %v954 = vpack.c.b16 %v914, %v912
        %v955 = vpack.c.b16 %v915, %v913
        %v956 = vpack.c.b16 %v918, %v916
        %v957 = vpack.c.b16 %v919, %v917
        %v958 = vpack.c.b16 %v922, %v920
        %v959 = vpack.c.b16 %v923, %v921
        %v960 = vpack.c.b16 %v926, %v924
        %v961 = vpack.c.b16 %v927, %v925
        %v962 = vpack.c.b16 %v930, %v928
        %v963 = vpack.c.b16 %v931, %v929
        %996 = vmatprep.subr.bf16.mxu0 %v947
        %997 = vmatpush1.bf16.msra.mxu0 %v946
        %998 = vmatprep.subr.bf16.mxu0 %v945
        %999 = vmatpush1.bf16.msra.mxu0 %v944
        %1000 = vmatprep.subr.bf16.mxu0 %v943
        %1001 = vmatpush1.bf16.msra.mxu0 %v942
        %1002 = vmatprep.subr.bf16.mxu0 %v941
        %1003 = vmatpush1.bf16.msra.mxu0 %v940
        %1004 = vmatprep.subr.bf16.mxu0 %v939
        %1005 = vmatpush1.bf16.msra.mxu0 %v938
        %1006 = vmatprep.subr.bf16.mxu0 %v937
        %1007 = vmatpush1.bf16.msra.mxu0 %v936
        %1008 = vmatprep.subr.bf16.mxu0 %v935
        %1009 = vmatpush1.bf16.msra.mxu0 %v934
        %1010 = vmatprep.subr.bf16.mxu0 %v933
        %1011 = vmatpush1.bf16.msra.mxu0 %v932
        %1012 = vmatprep.subr.bf16.mxu0 %v963
        %1013 = vmatpush2.bf16.msra.mxu0 %v962
        %1014 = vmatprep.subr.bf16.mxu0 %v961
        %1015 = vmatpush2.bf16.msra.mxu0 %v960
        %1016 = vmatprep.subr.bf16.mxu0 %v959
        %1017 = vmatpush2.bf16.msra.mxu0 %v958
        %1018 = vmatprep.subr.bf16.mxu0 %v957
        %1019 = vmatpush2.bf16.msra.mxu0 %v956
        %1020 = vmatprep.subr.bf16.mxu0 %v955
        %1021 = vmatpush2.bf16.msra.mxu0 %v954
        %1022 = vmatprep.subr.bf16.mxu0 %v953
        %1023 = vmatpush2.bf16.msra.mxu0 %v952
        %1024 = vmatprep.subr.bf16.mxu0 %v951
        %1025 = vmatpush2.bf16.msra.mxu0 %v950
        %1026 = vmatprep.subr.bf16.mxu0 %v949
        %1027 = vmatpush2.bf16.msra.mxu0 %v948
        %1028 = vmatprep.mubr.bf16.mxu0 %v777
        %1029 = vmatmul.mubr.bf16.gmra.mxu0 %v776
        %v1030 = vpop.f32.mrf.mxu0
        %v1031 = vadd.f32 %v829, %v1030
        %v1032 = vpop.f32.mrf.mxu0
        %v1033 = vadd.f32 %v833, %v1032
        %v1034 = vpop.f32.mrf.mxu0
        %v1035 = vadd.f32 %v829, %v1034
        %v1036 = vpop.f32.mrf.mxu0
        %v1037 = vadd.f32 %v833, %v1036
        %1038 = vmatprep.mubr.bf16.mxu0 %v779
        %1039 = vmatmul.mubr.bf16.gmra.mxu0 %v778
        %v1040 = vpop.f32.mrf.mxu0
        %v1041 = vadd.f32 %v829, %v1040
        %v1042 = vpop.f32.mrf.mxu0
        %v1043 = vadd.f32 %v833, %v1042
        %v1044 = vpop.f32.mrf.mxu0
        %v1045 = vadd.f32 %v829, %v1044
        %v1046 = vpop.f32.mrf.mxu0
        %v1047 = vadd.f32 %v833, %v1046
        %1048 = vmatprep.mubr.bf16.mxu0 %v781
        %1049 = vmatmul.mubr.bf16.gmra.mxu0 %v780
        %v1050 = vpop.f32.mrf.mxu0
        %v1051 = vadd.f32 %v829, %v1050
        %v1052 = vpop.f32.mrf.mxu0
        %v1053 = vadd.f32 %v833, %v1052
        %v1054 = vpop.f32.mrf.mxu0
        %v1055 = vadd.f32 %v829, %v1054
        %v1056 = vpop.f32.mrf.mxu0
        %v1057 = vadd.f32 %v833, %v1056
        %1058 = vmatprep.mubr.bf16.mxu0 %v783
        %1059 = vmatmul.mubr.bf16.gmra.mxu0 %v782
        %v1060 = vpop.f32.mrf.mxu0
        %v1061 = vadd.f32 %v829, %v1060
        %v1062 = vpop.f32.mrf.mxu0
        %v1063 = vadd.f32 %v833, %v1062
        %v1064 = vpop.f32.mrf.mxu0
        %v1065 = vadd.f32 %v829, %v1064
        %v1066 = vpop.f32.mrf.mxu0
        %v1067 = vadd.f32 %v833, %v1066
        %1068 = vmatprep.mubr.bf16.mxu0 %v785
        %1069 = vmatmul.mubr.bf16.gmra.mxu0 %v784
        %v1070 = vpop.f32.mrf.mxu0
        %v1071 = vadd.f32 %v829, %v1070
        %v1072 = vpop.f32.mrf.mxu0
        %v1073 = vadd.f32 %v833, %v1072
        %v1074 = vpop.f32.mrf.mxu0
        %v1075 = vadd.f32 %v829, %v1074
        %v1076 = vpop.f32.mrf.mxu0
        %v1077 = vadd.f32 %v833, %v1076
        %1078 = vmatprep.mubr.bf16.mxu0 %v787
        %1079 = vmatmul.mubr.bf16.gmra.mxu0 %v786
        %v1080 = vpop.f32.mrf.mxu0
        %v1081 = vadd.f32 %v829, %v1080
        %v1082 = vpop.f32.mrf.mxu0
        %v1083 = vadd.f32 %v833, %v1082
        %v1084 = vpop.f32.mrf.mxu0
        %v1085 = vadd.f32 %v829, %v1084
        %v1086 = vpop.f32.mrf.mxu0
        %v1087 = vadd.f32 %v833, %v1086
        %1088 = vmatprep.mubr.bf16.mxu0 %v789
        %1089 = vmatmul.mubr.bf16.gmra.mxu0 %v788
        %v1090 = vpop.f32.mrf.mxu0
        %v1091 = vadd.f32 %v829, %v1090
        %v1092 = vpop.f32.mrf.mxu0
        %v1093 = vadd.f32 %v833, %v1092
        %v1094 = vpop.f32.mrf.mxu0
        %v1095 = vadd.f32 %v829, %v1094
        %v1096 = vpop.f32.mrf.mxu0
        %v1097 = vadd.f32 %v833, %v1096
        %1098 = vmatprep.mubr.bf16.mxu0 %v791
        %1099 = vmatmul.mubr.bf16.gmra.mxu0 %v790
        %v1100 = vpop.f32.mrf.mxu0
        %v1101 = vadd.f32 %v829, %v1100
        %v1102 = vpop.f32.mrf.mxu0
        %v1103 = vadd.f32 %v833, %v1102
        %v1104 = vpop.f32.mrf.mxu0
        %v1105 = vadd.f32 %v829, %v1104
        %v1106 = vpop.f32.mrf.mxu0
        %v1107 = vadd.f32 %v833, %v1106
        %1108 = vdwg.mxu0
        %v1109 = vmul.f32 %v1033, 0.5
        %v1110 = vmul.f32 %v1037, 0.5
        %v1111 = vmul.f32 %v1043, 0.5
        %v1112 = vmul.f32 %v1047, 0.5
        %v1113 = vmul.f32 %v1053, 0.5
        %v1114 = vmul.f32 %v1057, 0.5
        %v1115 = vmul.f32 %v1063, 0.5
        %v1116 = vmul.f32 %v1067, 0.5
        %v1117 = vmul.f32 %v1073, 0.5
        %v1118 = vmul.f32 %v1077, 0.5
        %v1119 = vmul.f32 %v1083, 0.5
        %v1120 = vmul.f32 %v1087, 0.5
        %v1121 = vmul.f32 %v1093, 0.5
        %v1122 = vmul.f32 %v1097, 0.5
        %v1123 = vmul.f32 %v1103, 0.5
        %v1124 = vmul.f32 %v1107, 0.5
        %v1125 = vmul.f32 %v1109, 1.442695
        %v1126 = vpow.pop %v1125
        %v1127 = vmul.f32 %v1110, 1.442695
        %v1128 = vpow.pop %v1127
        %v1129 = vmul.f32 %v1111, 1.442695
        %v1130 = vpow.pop %v1129
        %v1131 = vmul.f32 %v1112, 1.442695
        %v1132 = vpow.pop %v1131
        %v1133 = vmul.f32 %v1113, 1.442695
        %v1134 = vpow.pop %v1133
        %v1135 = vmul.f32 %v1114, 1.442695
        %v1136 = vpow.pop %v1135
        %v1137 = vmul.f32 %v1115, 1.442695
        %v1138 = vpow.pop %v1137
        %v1139 = vmul.f32 %v1116, 1.442695
        %v1140 = vpow.pop %v1139
        %v1141 = vmul.f32 %v1117, 1.442695
        %v1142 = vpow.pop %v1141
        %v1143 = vmul.f32 %v1118, 1.442695
        %v1144 = vpow.pop %v1143
        %v1145 = vmul.f32 %v1119, 1.442695
        %v1146 = vpow.pop %v1145
        %v1147 = vmul.f32 %v1120, 1.442695
        %v1148 = vpow.pop %v1147
        %v1149 = vmul.f32 %v1121, 1.442695
        %v1150 = vpow.pop %v1149
        %v1151 = vmul.f32 %v1122, 1.442695
        %v1152 = vpow.pop %v1151
        %v1153 = vmul.f32 %v1123, 1.442695
        %v1154 = vpow.pop %v1153
        %v1155 = vmul.f32 %v1124, 1.442695
        %v1156 = vpow.pop %v1155
        %v1157 = vmul.f32 %v1126, %v507
        %v1158 = vmul.f32 %v1128, %v508
        %v1159 = vmul.f32 %v1130, %v509
        %v1160 = vmul.f32 %v1132, %v510
        %v1161 = vmul.f32 %v1134, %v511
        %v1162 = vmul.f32 %v1136, %v512
        %v1163 = vmul.f32 %v1138, %v513
        %v1164 = vmul.f32 %v1140, %v514
        %v1165 = vmul.f32 %v1142, %v515
        %v1166 = vmul.f32 %v1144, %v516
        %v1167 = vmul.f32 %v1146, %v517
        %v1168 = vmul.f32 %v1148, %v518
        %v1169 = vmul.f32 %v1150, %v519
        %v1170 = vmul.f32 %v1152, %v520
        %v1171 = vmul.f32 %v1154, %v521
        %v1172 = vmul.f32 %v1156, %v522
        %v1173 = vadd.f32 %v1031, %v1157
        %v1174 = vadd.f32 %v1035, %v1158
        %v1175 = vadd.f32 %v1041, %v1159
        %v1176 = vadd.f32 %v1045, %v1160
        %v1177 = vadd.f32 %v1051, %v1161
        %v1178 = vadd.f32 %v1055, %v1162
        %v1179 = vadd.f32 %v1061, %v1163
        %v1180 = vadd.f32 %v1065, %v1164
        %v1181 = vadd.f32 %v1071, %v1165
        %v1182 = vadd.f32 %v1075, %v1166
        %v1183 = vadd.f32 %v1081, %v1167
        %v1184 = vadd.f32 %v1085, %v1168
        %v1185 = vadd.f32 %v1091, %v1169
        %v1186 = vadd.f32 %v1095, %v1170
        %v1187 = vadd.f32 %v1101, %v1171
        %v1188 = vadd.f32 %v1105, %v1172
        %v1189 = vpack.c.bf16 %v1174, %v1173
        %v1190 = vpack.c.bf16 %v1176, %v1175
        %v1191 = vpack.c.bf16 %v1178, %v1177
        %v1192 = vpack.c.bf16 %v1180, %v1179
        %v1193 = vpack.c.bf16 %v1182, %v1181
        %v1194 = vpack.c.bf16 %v1184, %v1183
        %v1195 = vpack.c.bf16 %v1186, %v1185
        %v1196 = vpack.c.bf16 %v1188, %v1187
        %v1197 = vld [vmem:[%s6] sm:$0xff]
        %v1198 = vld [vmem:[%s6 + $0x8] sm:$0xff]
        %v1199 = vld [vmem:[%s6 + $0x10] sm:$0xff]
        %v1200 = vld [vmem:[%s6 + $0x18] sm:$0xff]
        %v1201 = vld [vmem:[%s6 + $0x20] sm:$0xff]
        %v1202 = vld [vmem:[%s6 + $0x28] sm:$0xff]
        %v1203 = vld [vmem:[%s6 + $0x30] sm:$0xff]
        %v1204 = vld [vmem:[%s6 + $0x38] sm:$0xff]
        %v1205 = vld [vmem:[%s6 + $0x40] sm:$0xff]
        %v1206 = vld [vmem:[%s6 + $0x48] sm:$0xff]
        %v1207 = vld [vmem:[%s6 + $0x50] sm:$0xff]
        %v1208 = vld [vmem:[%s6 + $0x58] sm:$0xff]
        %v1209 = vld [vmem:[%s6 + $0x60] sm:$0xff]
        %v1210 = vld [vmem:[%s6 + $0x68] sm:$0xff]
        %v1211 = vld [vmem:[%s6 + $0x70] sm:$0xff]
        %v1212 = vld [vmem:[%s6 + $0x78] sm:$0xff]
        %v1213 = vld [vmem:[%s7] sm:$0x3]
        %v1215 = vlaneseq
        %v1216 = vshrl.u32 %v1215, 7
        %v1217 = vsub.s32 0, %v1216
        %v1218 = vrot.slane %v1213, %v1217
        %v1219 = vlaneseq
        %v1220 = vshrl.u32 %v1219, 7
        %v1221 = vsub.s32 1, %v1220
        %v1222 = vrot.slane %v1213, %v1221
        %v1241 = vunpack.c.l.b16 %v1197
        %v1242 = vunpack.c.h.b16 %v1197
        %v1243 = vunpack.c.l.b16 %v1198
        %v1244 = vunpack.c.h.b16 %v1198
        %v1245 = vunpack.c.l.b16 %v1199
        %v1246 = vunpack.c.h.b16 %v1199
        %v1247 = vunpack.c.l.b16 %v1200
        %v1248 = vunpack.c.h.b16 %v1200
        %v1249 = vunpack.c.l.b16 %v1201
        %v1250 = vunpack.c.h.b16 %v1201
        %v1251 = vunpack.c.l.b16 %v1202
        %v1252 = vunpack.c.h.b16 %v1202
        %v1253 = vunpack.c.l.b16 %v1203
        %v1254 = vunpack.c.h.b16 %v1203
        %v1255 = vunpack.c.l.b16 %v1204
        %v1256 = vunpack.c.h.b16 %v1204
        %v1257 = vunpack.c.l.b16 %v1205
        %v1258 = vunpack.c.h.b16 %v1205
        %v1259 = vunpack.c.l.b16 %v1206
        %v1260 = vunpack.c.h.b16 %v1206
        %v1261 = vunpack.c.l.b16 %v1207
        %v1262 = vunpack.c.h.b16 %v1207
        %v1263 = vunpack.c.l.b16 %v1208
        %v1264 = vunpack.c.h.b16 %v1208
        %v1265 = vunpack.c.l.b16 %v1209
        %v1266 = vunpack.c.h.b16 %v1209
        %v1267 = vunpack.c.l.b16 %v1210
        %v1268 = vunpack.c.h.b16 %v1210
        %v1269 = vunpack.c.l.b16 %v1211
        %v1270 = vunpack.c.h.b16 %v1211
        %v1271 = vunpack.c.l.b16 %v1212
        %v1272 = vunpack.c.h.b16 %v1212
        %v1273 = vpack.c.b16 %v1243, %v1241
        %v1274 = vpack.c.b16 %v1244, %v1242
        %v1275 = vpack.c.b16 %v1247, %v1245
        %v1276 = vpack.c.b16 %v1248, %v1246
        %v1277 = vpack.c.b16 %v1251, %v1249
        %v1278 = vpack.c.b16 %v1252, %v1250
        %v1279 = vpack.c.b16 %v1255, %v1253
        %v1280 = vpack.c.b16 %v1256, %v1254
        %v1281 = vpack.c.b16 %v1259, %v1257
        %v1282 = vpack.c.b16 %v1260, %v1258
        %v1283 = vpack.c.b16 %v1263, %v1261
        %v1284 = vpack.c.b16 %v1264, %v1262
        %v1285 = vpack.c.b16 %v1267, %v1265
        %v1286 = vpack.c.b16 %v1268, %v1266
        %v1287 = vpack.c.b16 %v1271, %v1269
        %v1288 = vpack.c.b16 %v1272, %v1270
        %1305 = vmatprep.subr.bf16.mxu0 %v1288
        %1306 = vmatpush1.bf16.msra.mxu0 %v1287
        %1307 = vmatprep.subr.bf16.mxu0 %v1286
        %1308 = vmatpush1.bf16.msra.mxu0 %v1285
        %1309 = vmatprep.subr.bf16.mxu0 %v1284
        %1310 = vmatpush1.bf16.msra.mxu0 %v1283
        %1311 = vmatprep.subr.bf16.mxu0 %v1282
        %1312 = vmatpush1.bf16.msra.mxu0 %v1281
        %1313 = vmatprep.subr.bf16.mxu0 %v1280
        %1314 = vmatpush1.bf16.msra.mxu0 %v1279
        %1315 = vmatprep.subr.bf16.mxu0 %v1278
        %1316 = vmatpush1.bf16.msra.mxu0 %v1277
        %1317 = vmatprep.subr.bf16.mxu0 %v1276
        %1318 = vmatpush1.bf16.msra.mxu0 %v1275
        %1319 = vmatprep.subr.bf16.mxu0 %v1274
        %1320 = vmatpush1.bf16.msra.mxu0 %v1273
        %1321 = vmatprep.subr.bf16.mxu0 0
        %1322 = vmatpush2.bf16.msra.mxu0 0
        %1323 = vmatprep.subr.bf16.mxu0 0
        %1324 = vmatpush2.bf16.msra.mxu0 0
        %1325 = vmatprep.subr.bf16.mxu0 0
        %1326 = vmatpush2.bf16.msra.mxu0 0
        %1327 = vmatprep.subr.bf16.mxu0 0
        %1328 = vmatpush2.bf16.msra.mxu0 0
        %1329 = vmatprep.subr.bf16.mxu0 0
        %1330 = vmatpush2.bf16.msra.mxu0 0
        %1331 = vmatprep.subr.bf16.mxu0 0
        %1332 = vmatpush2.bf16.msra.mxu0 0
        %1333 = vmatprep.subr.bf16.mxu0 0
        %1334 = vmatpush2.bf16.msra.mxu0 0
        %1335 = vmatprep.subr.bf16.mxu0 0
        %1336 = vmatpush2.bf16.msra.mxu0 0
        %1337 = vmatprep.mubr.bf16.mxu0 0
        %1338 = vmatmul.mubr.bf16.gmra.mxu0 %v1189
        %v1339 = vpop.f32.mrf.mxu0
        %v1340 = vadd.f32 %v1218, %v1339
        %v1341 = vpop.f32.mrf.mxu0
        %v1342 = vadd.f32 %v1222, %v1341
        %v1343 = vpop.f32.mrf.mxu0
        %v1344 = vadd.f32 %v1218, %v1343
        %v1345 = vpop.f32.mrf.mxu0
        %v1346 = vadd.f32 %v1222, %v1345
        %1347 = vmatprep.mubr.bf16.mxu0 0
        %1348 = vmatmul.mubr.bf16.gmra.mxu0 %v1190
        %v1349 = vpop.f32.mrf.mxu0
        %v1350 = vadd.f32 %v1218, %v1349
        %v1351 = vpop.f32.mrf.mxu0
        %v1352 = vadd.f32 %v1222, %v1351
        %v1353 = vpop.f32.mrf.mxu0
        %v1354 = vadd.f32 %v1218, %v1353
        %v1355 = vpop.f32.mrf.mxu0
        %v1356 = vadd.f32 %v1222, %v1355
        %1357 = vmatprep.mubr.bf16.mxu0 0
        %1358 = vmatmul.mubr.bf16.gmra.mxu0 %v1191
        %v1359 = vpop.f32.mrf.mxu0
        %v1360 = vadd.f32 %v1218, %v1359
        %v1361 = vpop.f32.mrf.mxu0
        %v1362 = vadd.f32 %v1222, %v1361
        %v1363 = vpop.f32.mrf.mxu0
        %v1364 = vadd.f32 %v1218, %v1363
        %v1365 = vpop.f32.mrf.mxu0
        %v1366 = vadd.f32 %v1222, %v1365
        %1367 = vmatprep.mubr.bf16.mxu0 0
        %1368 = vmatmul.mubr.bf16.gmra.mxu0 %v1192
        %v1369 = vpop.f32.mrf.mxu0
        %v1370 = vadd.f32 %v1218, %v1369
        %v1371 = vpop.f32.mrf.mxu0
        %v1372 = vadd.f32 %v1222, %v1371
        %v1373 = vpop.f32.mrf.mxu0
        %v1374 = vadd.f32 %v1218, %v1373
        %v1375 = vpop.f32.mrf.mxu0
        %v1376 = vadd.f32 %v1222, %v1375
        %1377 = vmatprep.mubr.bf16.mxu0 0
        %1378 = vmatmul.mubr.bf16.gmra.mxu0 %v1193
        %v1379 = vpop.f32.mrf.mxu0
        %v1380 = vadd.f32 %v1218, %v1379
        %v1381 = vpop.f32.mrf.mxu0
        %v1382 = vadd.f32 %v1222, %v1381
        %v1383 = vpop.f32.mrf.mxu0
        %v1384 = vadd.f32 %v1218, %v1383
        %v1385 = vpop.f32.mrf.mxu0
        %v1386 = vadd.f32 %v1222, %v1385
        %1387 = vmatprep.mubr.bf16.mxu0 0
        %1388 = vmatmul.mubr.bf16.gmra.mxu0 %v1194
        %v1389 = vpop.f32.mrf.mxu0
        %v1390 = vadd.f32 %v1218, %v1389
        %v1391 = vpop.f32.mrf.mxu0
        %v1392 = vadd.f32 %v1222, %v1391
        %v1393 = vpop.f32.mrf.mxu0
        %v1394 = vadd.f32 %v1218, %v1393
        %v1395 = vpop.f32.mrf.mxu0
        %v1396 = vadd.f32 %v1222, %v1395
        %1397 = vmatprep.mubr.bf16.mxu0 0
        %1398 = vmatmul.mubr.bf16.gmra.mxu0 %v1195
        %v1399 = vpop.f32.mrf.mxu0
        %v1400 = vadd.f32 %v1218, %v1399
        %v1401 = vpop.f32.mrf.mxu0
        %v1402 = vadd.f32 %v1222, %v1401
        %v1403 = vpop.f32.mrf.mxu0
        %v1404 = vadd.f32 %v1218, %v1403
        %v1405 = vpop.f32.mrf.mxu0
        %v1406 = vadd.f32 %v1222, %v1405
        %1407 = vmatprep.mubr.bf16.mxu0 0
        %1408 = vmatmul.mubr.bf16.gmra.mxu0 %v1196
        %v1409 = vpop.f32.mrf.mxu0
        %v1410 = vadd.f32 %v1218, %v1409
        %v1411 = vpop.f32.mrf.mxu0
        %v1412 = vadd.f32 %v1222, %v1411
        %v1413 = vpop.f32.mrf.mxu0
        %v1414 = vadd.f32 %v1218, %v1413
        %v1415 = vpop.f32.mrf.mxu0
        %v1416 = vadd.f32 %v1222, %v1415
        %1417 = vdwg.mxu0
        %v1418 = vmax.f32 %v1340, 0.0
        %v1419 = vmax.f32 %v1342, 0.0
        %v1420 = vmax.f32 %v1344, 0.0
        %v1421 = vmax.f32 %v1346, 0.0
        %v1422 = vmax.f32 %v1350, 0.0
        %v1423 = vmax.f32 %v1352, 0.0
        %v1424 = vmax.f32 %v1354, 0.0
        %v1425 = vmax.f32 %v1356, 0.0
        %v1426 = vmax.f32 %v1360, 0.0
        %v1427 = vmax.f32 %v1362, 0.0
        %v1428 = vmax.f32 %v1364, 0.0
        %v1429 = vmax.f32 %v1366, 0.0
        %v1430 = vmax.f32 %v1370, 0.0
        %v1431 = vmax.f32 %v1372, 0.0
        %v1432 = vmax.f32 %v1374, 0.0
        %v1433 = vmax.f32 %v1376, 0.0
        %v1434 = vmax.f32 %v1380, 0.0
        %v1435 = vmax.f32 %v1382, 0.0
        %v1436 = vmax.f32 %v1384, 0.0
        %v1437 = vmax.f32 %v1386, 0.0
        %v1438 = vmax.f32 %v1390, 0.0
        %v1439 = vmax.f32 %v1392, 0.0
        %v1440 = vmax.f32 %v1394, 0.0
        %v1441 = vmax.f32 %v1396, 0.0
        %v1442 = vmax.f32 %v1400, 0.0
        %v1443 = vmax.f32 %v1402, 0.0
        %v1444 = vmax.f32 %v1404, 0.0
        %v1445 = vmax.f32 %v1406, 0.0
        %v1446 = vmax.f32 %v1410, 0.0
        %v1447 = vmax.f32 %v1412, 0.0
        %v1448 = vmax.f32 %v1414, 0.0
        %v1449 = vmax.f32 %v1416, 0.0
        %v1450 = vpack.c.bf16 %v1420, %v1418
        %v1451 = vpack.c.bf16 %v1421, %v1419
        %v1452 = vpack.c.bf16 %v1424, %v1422
        %v1453 = vpack.c.bf16 %v1425, %v1423
        %v1454 = vpack.c.bf16 %v1428, %v1426
        %v1455 = vpack.c.bf16 %v1429, %v1427
        %v1456 = vpack.c.bf16 %v1432, %v1430
        %v1457 = vpack.c.bf16 %v1433, %v1431
        %v1458 = vpack.c.bf16 %v1436, %v1434
        %v1459 = vpack.c.bf16 %v1437, %v1435
        %v1460 = vpack.c.bf16 %v1440, %v1438
        %v1461 = vpack.c.bf16 %v1441, %v1439
        %v1462 = vpack.c.bf16 %v1444, %v1442
        %v1463 = vpack.c.bf16 %v1445, %v1443
        %v1464 = vpack.c.bf16 %v1448, %v1446
        %v1465 = vpack.c.bf16 %v1449, %v1447
        %v1466 = vld [vmem:[#allocation2] sm:$0xf]
        %v1467 = vld [vmem:[#allocation2 + $0x4] sm:$0xf]
        %v1468 = vld [vmem:[#allocation2 + $0x8] sm:$0xf]
        %v1469 = vld [vmem:[#allocation2 + $0xc] sm:$0xf]
        %v1470 = vld [vmem:[#allocation2 + $0x10] sm:$0xf]
        %v1471 = vld [vmem:[#allocation2 + $0x14] sm:$0xf]
        %v1472 = vld [vmem:[#allocation2 + $0x18] sm:$0xf]
        %v1473 = vld [vmem:[#allocation2 + $0x1c] sm:$0xf]
        %v1474 = vld [vmem:[#allocation2 + $0x20] sm:$0xf]
        %v1475 = vld [vmem:[#allocation2 + $0x24] sm:$0xf]
        %v1476 = vld [vmem:[#allocation2 + $0x28] sm:$0xf]
        %v1477 = vld [vmem:[#allocation2 + $0x2c] sm:$0xf]
        %v1478 = vld [vmem:[#allocation2 + $0x30] sm:$0xf]
        %v1479 = vld [vmem:[#allocation2 + $0x34] sm:$0xf]
        %v1480 = vld [vmem:[#allocation2 + $0x38] sm:$0xf]
        %v1481 = vld [vmem:[#allocation2 + $0x3c] sm:$0xf]
        %v1482 = vld [vmem:[#allocation2 + $0x40] sm:$0xf]
        %v1483 = vld [vmem:[#allocation2 + $0x44] sm:$0xf]
        %v1484 = vld [vmem:[#allocation2 + $0x48] sm:$0xf]
        %v1485 = vld [vmem:[#allocation2 + $0x4c] sm:$0xf]
        %v1486 = vld [vmem:[#allocation2 + $0x50] sm:$0xf]
        %v1487 = vld [vmem:[#allocation2 + $0x54] sm:$0xf]
        %v1488 = vld [vmem:[#allocation2 + $0x58] sm:$0xf]
        %v1489 = vld [vmem:[#allocation2 + $0x5c] sm:$0xf]
        %v1490 = vld [vmem:[#allocation2 + $0x60] sm:$0xf]
        %v1491 = vld [vmem:[#allocation2 + $0x64] sm:$0xf]
        %v1492 = vld [vmem:[#allocation2 + $0x68] sm:$0xf]
        %v1493 = vld [vmem:[#allocation2 + $0x6c] sm:$0xf]
        %v1494 = vld [vmem:[#allocation2 + $0x70] sm:$0xf]
        %v1495 = vld [vmem:[#allocation2 + $0x74] sm:$0xf]
        %v1496 = vld [vmem:[#allocation2 + $0x78] sm:$0xf]
        %v1497 = vld [vmem:[#allocation2 + $0x7c] sm:$0xf]
        %v1498 = vld [vmem:[%s9] sm:$0x1]
        %v1500 = vlaneseq
        %v1501 = vshrl.u32 %v1500, 7
        %v1502 = vsub.s32 0, %v1501
        %v1503 = vrot.slane %v1498, %v1502
        %v1537 = vunpack.c.l.b16 %v1466
        %v1538 = vunpack.c.l.b16 %v1467
        %v1539 = vunpack.c.l.b16 %v1468
        %v1540 = vunpack.c.l.b16 %v1469
        %v1541 = vunpack.c.l.b16 %v1470
        %v1542 = vunpack.c.l.b16 %v1471
        %v1543 = vunpack.c.l.b16 %v1472
        %v1544 = vunpack.c.l.b16 %v1473
        %v1545 = vunpack.c.l.b16 %v1474
        %v1546 = vunpack.c.l.b16 %v1475
        %v1547 = vunpack.c.l.b16 %v1476
        %v1548 = vunpack.c.l.b16 %v1477
        %v1549 = vunpack.c.l.b16 %v1478
        %v1550 = vunpack.c.l.b16 %v1479
        %v1551 = vunpack.c.l.b16 %v1480
        %v1552 = vunpack.c.l.b16 %v1481
        %v1553 = vunpack.c.l.b16 %v1482
        %v1554 = vunpack.c.l.b16 %v1483
        %v1555 = vunpack.c.l.b16 %v1484
        %v1556 = vunpack.c.l.b16 %v1485
        %v1557 = vunpack.c.l.b16 %v1486
        %v1558 = vunpack.c.l.b16 %v1487
        %v1559 = vunpack.c.l.b16 %v1488
        %v1560 = vunpack.c.l.b16 %v1489
        %v1561 = vunpack.c.l.b16 %v1490
        %v1562 = vunpack.c.l.b16 %v1491
        %v1563 = vunpack.c.l.b16 %v1492
        %v1564 = vunpack.c.l.b16 %v1493
        %v1565 = vunpack.c.l.b16 %v1494
        %v1566 = vunpack.c.l.b16 %v1495
        %v1567 = vunpack.c.l.b16 %v1496
        %v1568 = vunpack.c.l.b16 %v1497
        %v1569 = vpack.c.b16 %v1538, %v1537
        %v1570 = vpack.c.b16 %v1540, %v1539
        %v1571 = vpack.c.b16 %v1542, %v1541
        %v1572 = vpack.c.b16 %v1544, %v1543
        %v1573 = vpack.c.b16 %v1546, %v1545
        %v1574 = vpack.c.b16 %v1548, %v1547
        %v1575 = vpack.c.b16 %v1550, %v1549
        %v1576 = vpack.c.b16 %v1552, %v1551
        %v1577 = vpack.c.b16 %v1554, %v1553
        %v1578 = vpack.c.b16 %v1556, %v1555
        %v1579 = vpack.c.b16 %v1558, %v1557
        %v1580 = vpack.c.b16 %v1560, %v1559
        %v1581 = vpack.c.b16 %v1562, %v1561
        %v1582 = vpack.c.b16 %v1564, %v1563
        %v1583 = vpack.c.b16 %v1566, %v1565
        %v1584 = vpack.c.b16 %v1568, %v1567
        %1601 = vmatprep.subr.bf16.mxu0 0
        %1602 = vmatpush1.bf16.msra.mxu0 %v1576
        %1603 = vmatprep.subr.bf16.mxu0 0
        %1604 = vmatpush1.bf16.msra.mxu0 %v1575
        %1605 = vmatprep.subr.bf16.mxu0 0
        %1606 = vmatpush1.bf16.msra.mxu0 %v1574
        %1607 = vmatprep.subr.bf16.mxu0 0
        %1608 = vmatpush1.bf16.msra.mxu0 %v1573
        %1609 = vmatprep.subr.bf16.mxu0 0
        %1610 = vmatpush1.bf16.msra.mxu0 %v1572
        %1611 = vmatprep.subr.bf16.mxu0 0
        %1612 = vmatpush1.bf16.msra.mxu0 %v1571
        %1613 = vmatprep.subr.bf16.mxu0 0
        %1614 = vmatpush1.bf16.msra.mxu0 %v1570
        %1615 = vmatprep.subr.bf16.mxu0 0
        %1616 = vmatpush1.bf16.msra.mxu0 %v1569
        %1617 = vmatprep.subr.bf16.mxu0 0
        %1618 = vmatpush2.bf16.msra.mxu0 %v1584
        %1619 = vmatprep.subr.bf16.mxu0 0
        %1620 = vmatpush2.bf16.msra.mxu0 %v1583
        %1621 = vmatprep.subr.bf16.mxu0 0
        %1622 = vmatpush2.bf16.msra.mxu0 %v1582
        %1623 = vmatprep.subr.bf16.mxu0 0
        %1624 = vmatpush2.bf16.msra.mxu0 %v1581
        %1625 = vmatprep.subr.bf16.mxu0 0
        %1626 = vmatpush2.bf16.msra.mxu0 %v1580
        %1627 = vmatprep.subr.bf16.mxu0 0
        %1628 = vmatpush2.bf16.msra.mxu0 %v1579
        %1629 = vmatprep.subr.bf16.mxu0 0
        %1630 = vmatpush2.bf16.msra.mxu0 %v1578
        %1631 = vmatprep.subr.bf16.mxu0 0
        %1632 = vmatpush2.bf16.msra.mxu0 %v1577
        %1633 = vmatprep.mubr.bf16.mxu0 %v1451
        %1634 = vmatmul.mubr.bf16.gmra.mxu0 %v1450
        %v1635 = vpop.f32.mrf.mxu0
        %v1636 = vadd.f32 %v1503, %v1635
        %v1637 = vpop.f32.mrf.mxu0
        %v1638 = vpop.f32.mrf.mxu0
        %v1639 = vadd.f32 %v1503, %v1638
        %v1640 = vpop.f32.mrf.mxu0
        %1641 = vmatprep.mubr.bf16.mxu0 %v1453
        %1642 = vmatmul.mubr.bf16.gmra.mxu0 %v1452
        %v1643 = vpop.f32.mrf.mxu0
        %v1644 = vadd.f32 %v1503, %v1643
        %v1645 = vpop.f32.mrf.mxu0
        %v1646 = vpop.f32.mrf.mxu0
        %v1647 = vadd.f32 %v1503, %v1646
        %v1648 = vpop.f32.mrf.mxu0
        %1649 = vmatprep.mubr.bf16.mxu0 %v1455
        %1650 = vmatmul.mubr.bf16.gmra.mxu0 %v1454
        %v1651 = vpop.f32.mrf.mxu0
        %v1652 = vadd.f32 %v1503, %v1651
        %v1653 = vpop.f32.mrf.mxu0
        %v1654 = vpop.f32.mrf.mxu0
        %v1655 = vadd.f32 %v1503, %v1654
        %v1656 = vpop.f32.mrf.mxu0
        %1657 = vmatprep.mubr.bf16.mxu0 %v1457
        %1658 = vmatmul.mubr.bf16.gmra.mxu0 %v1456
        %v1659 = vpop.f32.mrf.mxu0
        %v1660 = vadd.f32 %v1503, %v1659
        %v1661 = vpop.f32.mrf.mxu0
        %v1662 = vpop.f32.mrf.mxu0
        %v1663 = vadd.f32 %v1503, %v1662
        %v1664 = vpop.f32.mrf.mxu0
        %1665 = vmatprep.mubr.bf16.mxu0 %v1459
        %1666 = vmatmul.mubr.bf16.gmra.mxu0 %v1458
        %v1667 = vpop.f32.mrf.mxu0
        %v1668 = vadd.f32 %v1503, %v1667
        %v1669 = vpop.f32.mrf.mxu0
        %v1670 = vpop.f32.mrf.mxu0
        %v1671 = vadd.f32 %v1503, %v1670
        %v1672 = vpop.f32.mrf.mxu0
        %1673 = vmatprep.mubr.bf16.mxu0 %v1461
        %1674 = vmatmul.mubr.bf16.gmra.mxu0 %v1460
        %v1675 = vpop.f32.mrf.mxu0
        %v1676 = vadd.f32 %v1503, %v1675
        %v1677 = vpop.f32.mrf.mxu0
        %v1678 = vpop.f32.mrf.mxu0
        %v1679 = vadd.f32 %v1503, %v1678
        %v1680 = vpop.f32.mrf.mxu0
        %1681 = vmatprep.mubr.bf16.mxu0 %v1463
        %1682 = vmatmul.mubr.bf16.gmra.mxu0 %v1462
        %v1683 = vpop.f32.mrf.mxu0
        %v1684 = vadd.f32 %v1503, %v1683
        %v1685 = vpop.f32.mrf.mxu0
        %v1686 = vpop.f32.mrf.mxu0
        %v1687 = vadd.f32 %v1503, %v1686
        %v1688 = vpop.f32.mrf.mxu0
        %1689 = vmatprep.mubr.bf16.mxu0 %v1465
        %1690 = vmatmul.mubr.bf16.gmra.mxu0 %v1464
        %v1691 = vpop.f32.mrf.mxu0
        %v1692 = vadd.f32 %v1503, %v1691
        %v1693 = vpop.f32.mrf.mxu0
        %v1694 = vpop.f32.mrf.mxu0
        %v1695 = vadd.f32 %v1503, %v1694
        %v1696 = vpop.f32.mrf.mxu0
        %1697 = vdwg.mxu0
        %v1698 = vtanh.pop %v1636
        %v1699 = vtanh.pop %v1639
        %v1700 = vtanh.pop %v1644
        %v1701 = vtanh.pop %v1647
        %v1702 = vtanh.pop %v1652
        %v1703 = vtanh.pop %v1655
        %v1704 = vtanh.pop %v1660
        %v1705 = vtanh.pop %v1663
        %v1706 = vtanh.pop %v1668
        %v1707 = vtanh.pop %v1671
        %v1708 = vtanh.pop %v1676
        %v1709 = vtanh.pop %v1679
        %v1710 = vtanh.pop %v1684
        %v1711 = vtanh.pop %v1687
        %v1712 = vtanh.pop %v1692
        %v1713 = vtanh.pop %v1695
        %1714 = vst [vmem:[%s436] sm:$0xff] %v1698
        %1715 = vst [vmem:[%s436 + $0x8] sm:$0xff] %v1699
        %1716 = vst [vmem:[%s436 + $0x10] sm:$0xff] %v1700
        %1717 = vst [vmem:[%s436 + $0x18] sm:$0xff] %v1701
        %1718 = vst [vmem:[%s436 + $0x20] sm:$0xff] %v1702
        %1719 = vst [vmem:[%s436 + $0x28] sm:$0xff] %v1703
        %1720 = vst [vmem:[%s436 + $0x30] sm:$0xff] %v1704
        %1721 = vst [vmem:[%s436 + $0x38] sm:$0xff] %v1705
        %1722 = vst [vmem:[%s436 + $0x40] sm:$0xff] %v1706
        %1723 = vst [vmem:[%s436 + $0x48] sm:$0xff] %v1707
        %1724 = vst [vmem:[%s436 + $0x50] sm:$0xff] %v1708
        %1725 = vst [vmem:[%s436 + $0x58] sm:$0xff] %v1709
        %1726 = vst [vmem:[%s436 + $0x60] sm:$0xff] %v1710
        %1727 = vst [vmem:[%s436 + $0x68] sm:$0xff] %v1711
        %1728 = vst [vmem:[%s436 + $0x70] sm:$0xff] %v1712
        %1729 = vst [vmem:[%s436 + $0x78] sm:$0xff] %v1713
        %1730 = vst [vmem:[%s442] sm:$0xff] %v1031
        %1731 = vst [vmem:[%s442 + $0x8] sm:$0xff] %v1033
        %1732 = vst [vmem:[%s442 + $0x10] sm:$0xff] %v1035
        %1733 = vst [vmem:[%s442 + $0x18] sm:$0xff] %v1037
        %1734 = vst [vmem:[%s442 + $0x20] sm:$0xff] %v1041
        %1735 = vst [vmem:[%s442 + $0x28] sm:$0xff] %v1043
        %1736 = vst [vmem:[%s442 + $0x30] sm:$0xff] %v1045
        %1737 = vst [vmem:[%s442 + $0x38] sm:$0xff] %v1047
        %1738 = vst [vmem:[%s442 + $0x40] sm:$0xff] %v1051
        %1739 = vst [vmem:[%s442 + $0x48] sm:$0xff] %v1053
        %1740 = vst [vmem:[%s442 + $0x50] sm:$0xff] %v1055
        %1741 = vst [vmem:[%s442 + $0x58] sm:$0xff] %v1057
        %1742 = vst [vmem:[%s442 + $0x60] sm:$0xff] %v1061
        %1743 = vst [vmem:[%s442 + $0x68] sm:$0xff] %v1063
        %1744 = vst [vmem:[%s442 + $0x70] sm:$0xff] %v1065
        %1745 = vst [vmem:[%s442 + $0x78] sm:$0xff] %v1067
        %1746 = vst [vmem:[%s442 + $0x80] sm:$0xff] %v1071
        %1747 = vst [vmem:[%s442 + $0x88] sm:$0xff] %v1073
        %1748 = vst [vmem:[%s442 + $0x90] sm:$0xff] %v1075
        %1749 = vst [vmem:[%s442 + $0x98] sm:$0xff] %v1077
        %1750 = vst [vmem:[%s442 + $0xa0] sm:$0xff] %v1081
        %1751 = vst [vmem:[%s442 + $0xa8] sm:$0xff] %v1083
        %1752 = vst [vmem:[%s442 + $0xb0] sm:$0xff] %v1085
        %1753 = vst [vmem:[%s442 + $0xb8] sm:$0xff] %v1087
        %1754 = vst [vmem:[%s442 + $0xc0] sm:$0xff] %v1091
        %1755 = vst [vmem:[%s442 + $0xc8] sm:$0xff] %v1093
        %1756 = vst [vmem:[%s442 + $0xd0] sm:$0xff] %v1095
        %1757 = vst [vmem:[%s442 + $0xd8] sm:$0xff] %v1097
        %1758 = vst [vmem:[%s442 + $0xe0] sm:$0xff] %v1101
        %1759 = vst [vmem:[%s442 + $0xe8] sm:$0xff] %v1103
        %1760 = vst [vmem:[%s442 + $0xf0] sm:$0xff] %v1105
        %1761 = vst [vmem:[%s442 + $0xf8] sm:$0xff] %v1107
        %s1762 = sand.u32 %s255, 1
        %s1763 = scalar_lea.sflag [#allocation4], %s1762
        %s1764 = sand.u32 %s255, 1
        %s1765 = smul.addr %s1764, 128
        %s1766 = scalar_lea.vmem [#allocation5], %s1765
        %s1767 = sand.u32 %s281, 1
        %s1768 = sand.u32 %s281, 1
        %s1769 = smul.addr %s1768, 256
        %s1770 = scalar_lea.vmem [#allocation6], %s1769
        // Predicated region
        $region65: #{vae_forward.1} parent=59 // pred_check
          %p1771 = pneg %p265
        $region66: #{vae_forward.1} parent=59 // pred_check_branch
          %1773 = sbr.rel (%p1771) target = $region68
        $region67: #{vae_forward.1} parent=59 // pred_region
          %s1774 = smul.u32 16, %s27
          %s1775 = ssub.s32 25, %s1774
          %p1776 = scmp.lt.s32.totalorder %s1775, 16
          %s1777 = scalar_select %p1776, %s1775, 16
          %s1778 = smul.u32 128, %s1777
          %s1780 = ssub.s32 2048, %s1778
          %1781 = vsyncadd %s1763, %s1780
          %p1782 = scmp.ne.s32.totalorder 0, %s1778
          %s1783 = smul.addr %s1774, 128
          %s1784 = scalar_lea.hbm %s10, %s1783
          %s1785 = smul.u32 8, %s1777
          %s1786 = sshll.u32 %s1766, 4
          %s1787 = int_to_ptr.vmem [resolvable:$true] %s1786
          %s1788 = sshll.u32 %s1785, 4
          %1792 = dma.vmem_to_hbm [thread:$0]  (%p1782), %s1787, %s1788, %s1784, %s1763, 128, 128, 8
        $region68: #{vae_forward.1} parent=59 // pred_fallthru
          _
        // Predicated region
        $region69: #{vae_forward.1} parent=59 // pred_check
          %p1793 = pneg %p291
        $region70: #{vae_forward.1} parent=59 // pred_check_branch
          %1795 = sbr.rel (%p1793) target = $region72
        $region71: #{vae_forward.1} parent=59 // pred_region
          %s1796 = smul.u32 16, %s27
          %s1797 = ssub.s32 25, %s1796
          %p1798 = scmp.lt.s32.totalorder %s1797, 16
          %s1799 = scalar_select %p1798, %s1797, 16
          %s1800 = smul.u32 128, %s1799
          %s1801 = smul.u32 %s1800, 2
          %p1802 = scmp.ne.s32.totalorder 0, %s1801
          %s1803 = smul.addr %s1796, 2
          %s1804 = smul.addr %s1803, 8
          %s1805 = scalar_lea.vmem %s11, %s1804
          // Predicated region
          $region73: #{vae_forward.1} parent=71 // pred_check
            %p1806 = pneg %p1802
          $region74: #{vae_forward.1} parent=71 // pred_check_branch
            %1808 = sbr.rel (%p1806) target = $region76
          $region75: #{vae_forward.1} parent=71 // pred_region
            // Predicated region
            $region77: #{vae_forward.1} parent=75 // pred_check
              _
            $region78: #{vae_forward.1} parent=75 // pred_check_branch
              %1810 = sbr.rel (0) target = $region80
            $region79: #{vae_forward.1} parent=75 // pred_region
              %s1811 = sshrl.u32 %s1799, 4
              // While loop
              $region81: #{vae_forward.1} parent=79 // loop_pre_header
                _
              $region82: #{vae_forward.1} parent=79 // loop_header
                %s1813 = sphi 0, %s1815
                %p1814 = scmp.ge.s32.totalorder %s1813, %s1811
                %s1818 = sphi 0, %s1887
                %s1819 = sphi %s1770, %s1890
                %s1820 = sphi %s1805, %s1891
              $region83: #{vae_forward.1} parent=79 // loop_header_branch
                %1817 = sbr.rel (%p1814) target = $region87
              $region84: #{vae_forward.1} parent=79 // loop_body
                %v1821 = vld [vmem:[%s1819] sm:$0xff]
                %1822 = vst [vmem:[%s1820] sm:$0xff] %v1821
                %v1823 = vld [vmem:[%s1819 + $0x10] sm:$0xff]
                %1824 = vst [vmem:[%s1820 + $0x10] sm:$0xff] %v1823
                %v1825 = vld [vmem:[%s1819 + $0x20] sm:$0xff]
                %1826 = vst [vmem:[%s1820 + $0x20] sm:$0xff] %v1825
                %v1827 = vld [vmem:[%s1819 + $0x30] sm:$0xff]
                %1828 = vst [vmem:[%s1820 + $0x30] sm:$0xff] %v1827
                %v1829 = vld [vmem:[%s1819 + $0x40] sm:$0xff]
                %1830 = vst [vmem:[%s1820 + $0x40] sm:$0xff] %v1829
                %v1831 = vld [vmem:[%s1819 + $0x50] sm:$0xff]
                %1832 = vst [vmem:[%s1820 + $0x50] sm:$0xff] %v1831
                %v1833 = vld [vmem:[%s1819 + $0x60] sm:$0xff]
                %1834 = vst [vmem:[%s1820 + $0x60] sm:$0xff] %v1833
                %v1835 = vld [vmem:[%s1819 + $0x70] sm:$0xff]
                %1836 = vst [vmem:[%s1820 + $0x70] sm:$0xff] %v1835
                %v1837 = vld [vmem:[%s1819 + $0x80] sm:$0xff]
                %1838 = vst [vmem:[%s1820 + $0x80] sm:$0xff] %v1837
                %v1839 = vld [vmem:[%s1819 + $0x90] sm:$0xff]
                %1840 = vst [vmem:[%s1820 + $0x90] sm:$0xff] %v1839
                %v1841 = vld [vmem:[%s1819 + $0xa0] sm:$0xff]
                %1842 = vst [vmem:[%s1820 + $0xa0] sm:$0xff] %v1841
                %v1843 = vld [vmem:[%s1819 + $0xb0] sm:$0xff]
                %1844 = vst [vmem:[%s1820 + $0xb0] sm:$0xff] %v1843
                %v1845 = vld [vmem:[%s1819 + $0xc0] sm:$0xff]
                %1846 = vst [vmem:[%s1820 + $0xc0] sm:$0xff] %v1845
                %v1847 = vld [vmem:[%s1819 + $0xd0] sm:$0xff]
                %1848 = vst [vmem:[%s1820 + $0xd0] sm:$0xff] %v1847
                %v1849 = vld [vmem:[%s1819 + $0xe0] sm:$0xff]
                %1850 = vst [vmem:[%s1820 + $0xe0] sm:$0xff] %v1849
                %v1851 = vld [vmem:[%s1819 + $0xf0] sm:$0xff]
                %1852 = vst [vmem:[%s1820 + $0xf0] sm:$0xff] %v1851
                %v1853 = vld [vmem:[%s1819 + $0x8] sm:$0xff]
                %1854 = vst [vmem:[%s1820 + $0x8] sm:$0xff] %v1853
                %v1855 = vld [vmem:[%s1819 + $0x18] sm:$0xff]
                %1856 = vst [vmem:[%s1820 + $0x18] sm:$0xff] %v1855
                %v1857 = vld [vmem:[%s1819 + $0x28] sm:$0xff]
                %1858 = vst [vmem:[%s1820 + $0x28] sm:$0xff] %v1857
                %v1859 = vld [vmem:[%s1819 + $0x38] sm:$0xff]
                %1860 = vst [vmem:[%s1820 + $0x38] sm:$0xff] %v1859
                %v1861 = vld [vmem:[%s1819 + $0x48] sm:$0xff]
                %1862 = vst [vmem:[%s1820 + $0x48] sm:$0xff] %v1861
                %v1863 = vld [vmem:[%s1819 + $0x58] sm:$0xff]
                %1864 = vst [vmem:[%s1820 + $0x58] sm:$0xff] %v1863
                %v1865 = vld [vmem:[%s1819 + $0x68] sm:$0xff]
                %1866 = vst [vmem:[%s1820 + $0x68] sm:$0xff] %v1865
                %v1867 = vld [vmem:[%s1819 + $0x78] sm:$0xff]
                %1868 = vst [vmem:[%s1820 + $0x78] sm:$0xff] %v1867
                %v1869 = vld [vmem:[%s1819 + $0x88] sm:$0xff]
                %1870 = vst [vmem:[%s1820 + $0x88] sm:$0xff] %v1869
                %v1871 = vld [vmem:[%s1819 + $0x98] sm:$0xff]
                %1872 = vst [vmem:[%s1820 + $0x98] sm:$0xff] %v1871
                %v1873 = vld [vmem:[%s1819 + $0xa8] sm:$0xff]
                %1874 = vst [vmem:[%s1820 + $0xa8] sm:$0xff] %v1873
                %v1875 = vld [vmem:[%s1819 + $0xb8] sm:$0xff]
                %1876 = vst [vmem:[%s1820 + $0xb8] sm:$0xff] %v1875
                %v1877 = vld [vmem:[%s1819 + $0xc8] sm:$0xff]
                %1878 = vst [vmem:[%s1820 + $0xc8] sm:$0xff] %v1877
                %v1879 = vld [vmem:[%s1819 + $0xd8] sm:$0xff]
                %1880 = vst [vmem:[%s1820 + $0xd8] sm:$0xff] %v1879
                %v1881 = vld [vmem:[%s1819 + $0xe8] sm:$0xff]
                %1882 = vst [vmem:[%s1820 + $0xe8] sm:$0xff] %v1881
                %v1883 = vld [vmem:[%s1819 + $0xf8] sm:$0xff]
                %1884 = vst [vmem:[%s1820 + $0xf8] sm:$0xff] %v1883
                %s1885 = sadd.s32 1, %s1818
                %p1886 = scmp.ge.s32.totalorder %s1885, %s1811
                %s1887 = scalar_select %p1886, 0, %s1885
                %s1888 = smul.u32 %s1887, 256
                %s1889 = smul.u32 %s1887, 256
                %s1890 = scalar_lea.vmem %s1770, %s1888 [#allocation6]
                %s1891 = scalar_lea.vmem %s1805, %s1889
              $region85: #{vae_forward.1} parent=79 // loop_footer
                %s1815 = sadd.s32 %s1813, 1
              $region86: #{vae_forward.1} parent=79 // loop_footer_branch
                %1812 = sbr.rel target = $region82
              $region87: #{vae_forward.1} parent=79 // loop_exit
                _
              %s1892 = sshrl.u32 %s1799, 4
              %s1893 = sand.u32 %s1799, 15
              %s1894 = smul.u32 %s1892, 16
              %s1895 = smul.u32 16, %s1894
              %s1896 = scalar_lea.vmem %s1770, %s1895 [#allocation6]
              %s1897 = smul.u32 16, %s1894
              %s1898 = scalar_lea.vmem %s1805, %s1897
              // While loop
              $region88: #{vae_forward.1} parent=79 // loop_pre_header
                _
              $region89: #{vae_forward.1} parent=79 // loop_header
                %s1900 = sphi 0, %s1902
                %p1901 = scmp.ge.s32.totalorder %s1900, %s1893
                %s1905 = sphi 0, %s1914
                %s1906 = sphi %s1896, %s1917
                %s1907 = sphi %s1898, %s1918
              $region90: #{vae_forward.1} parent=79 // loop_header_branch
                %1904 = sbr.rel (%p1901) target = $region94
              $region91: #{vae_forward.1} parent=79 // loop_body
                %v1908 = vld [vmem:[%s1906] sm:$0xff]
                %1909 = vst [vmem:[%s1907] sm:$0xff] %v1908
                %v1910 = vld [vmem:[%s1906 + $0x8] sm:$0xff]
                %1911 = vst [vmem:[%s1907 + $0x8] sm:$0xff] %v1910
                %s1912 = sadd.s32 1, %s1905
                %p1913 = scmp.ge.s32.totalorder %s1912, %s1893
                %s1914 = scalar_select %p1913, 0, %s1912
                %s1915 = smul.u32 %s1914, 16
                %s1916 = smul.u32 %s1914, 16
                %s1917 = scalar_lea.vmem %s1896, %s1915 [#allocation6]
                %s1918 = scalar_lea.vmem %s1898, %s1916
              $region92: #{vae_forward.1} parent=79 // loop_footer
                %s1902 = sadd.s32 %s1900, 1
              $region93: #{vae_forward.1} parent=79 // loop_footer_branch
                %1899 = sbr.rel target = $region89
              $region94: #{vae_forward.1} parent=79 // loop_exit
                _
            $region80: #{vae_forward.1} parent=75 // pred_fallthru
              _
            // Predicated region
            $region95: #{vae_forward.1} parent=75 // pred_check
              _
            $region96: #{vae_forward.1} parent=75 // pred_check_branch
              %1920 = sbr.rel target = $region98
            $region97: #{vae_forward.1} parent=75 // pred_region
              _
            $region98: #{vae_forward.1} parent=75 // pred_fallthru
              _
          $region76: #{vae_forward.1} parent=71 // pred_fallthru
            _
          %1921 = vnop
        $region72: #{vae_forward.1} parent=59 // pred_fallthru
          _
      $region60: #{vae_forward.1} parent=5 // pred_fallthru
        _
      %p1922 = scmp.le.s32.totalorder 2, %s22
      // Predicated region
      $region99: #{vae_forward.1} parent=5 // pred_check
        %p1923 = pneg %p1922
      $region100: #{vae_forward.1} parent=5 // pred_check_branch
        %1925 = sbr.rel (%p1923) target = $region102
      $region101: #{vae_forward.1} parent=5 // pred_region
        %s1926 = ssub.s32 %s22, 2
        // Predicated region
        $region103: #{vae_forward.1} parent=101 // pred_check
          %p1927 = pneg %p271
        $region104: #{vae_forward.1} parent=101 // pred_check_branch
          %1929 = sbr.rel (%p1927) target = $region106
        $region105: #{vae_forward.1} parent=101 // pred_region
          %s1930 = sand.u32 %s256, 1
          %s1931 = scalar_lea.sflag [#allocation4], %s1930
          %s1932 = sand.u32 %s256, 1
          %s1933 = smul.addr %s1932, 128
          %s1934 = scalar_lea.vmem [#allocation5], %s1933
          %1935 = dma.done %s1931, 2048
        $region106: #{vae_forward.1} parent=101 // pred_fallthru
          _
        // Predicated region
        $region107: #{vae_forward.1} parent=101 // pred_check
          %p1936 = pneg %p297
        $region108: #{vae_forward.1} parent=101 // pred_check_branch
          %1938 = sbr.rel (%p1936) target = $region110
        $region109: #{vae_forward.1} parent=101 // pred_region
          %s1939 = sand.u32 %s282, 1
          %s1940 = sand.u32 %s282, 1
          %s1941 = smul.addr %s1940, 256
          %s1942 = scalar_lea.vmem [#allocation6], %s1941
        $region110: #{vae_forward.1} parent=101 // pred_fallthru
          _
      $region102: #{vae_forward.1} parent=5 // pred_fallthru
        _
    $region6: #{vae_forward.1} parent=1 // loop_footer
      %s26 = sadd.s32 1, %s22
    $region7: #{vae_forward.1} parent=1 // loop_footer_branch
      %21 = sbr.rel target = $region3
    $region8: #{vae_forward.1} parent=1 // loop_exit
      _
    %1943 = vsyncpa [#allocation3], 1
    %s1944 = scalar_lea.sflag [#allocation3], 1
    %1945 = vsyncpa %s1944, 1
    %1946 = vsyncpa [#allocation4], 1
    %s1947 = scalar_lea.sflag [#allocation4], 1
    %1948 = vsyncpa %s1947, 1

</llo_original>
